<compile_context>
chip_gen: v5e
topology: v5e:2x2
jax: 0.10.0
libtpu: 0.0.40
codegen_flags: <defaults>
</compile_context>

<pallas_src>
import functools

import jax
import jax.numpy as jnp
import numpy as np
from jax import lax
from jax.experimental import pallas as pl
from jax.experimental.pallas import tpu as pltpu


def _round_up(x, m):
    return ((x + m - 1) // m) * m


def _vmem_capacity_bytes():
    """Physical per-core VMEM; conservative fallback (v7x per-TC = 64 MiB)."""
    try:
        info = pltpu.get_tpu_info()
        cap = getattr(info, "vmem_capacity_bytes", None)
        if cap:
            return int(cap)
    except Exception:
        pass
    return 64 * 1024 * 1024


def _default_target_rows():
    """MXU M-dim target per grid step: 128 on v5e, 512 on v6e, 256 otherwise."""
    try:
        kind = jax.devices()[0].device_kind.lower()
        if "v5" in kind:
            return 128
        if "v6" in kind:
            return 512
    except Exception:
        pass
    return 256


def _attn_pool_kernel(x_ref, pos_ref, wq_ref, bq_ref, wk_ref, bk_ref,
                      wv_ref, bv_ref, wc_ref, bc_ref, sel_ref, selt_ref, o_ref,
                      *, seq_len, seq_pad):
    # x_ref:   (B, L, C)  bf16 spatial tokens for a tile of B images
    # pos_ref: (S, C)     bf16 positional embedding, S = L + 1
    # wq_ref:  (C, C)     bf16 Wq^T * scale    bq_ref: (1, C) f32 (bq * scale)
    # wk_ref:  (C, C)     bf16 Wk^T            bk_ref: (1, C) f32
    # wv_ref:  (C, C)     bf16 Wv^T            bv_ref: (1, C) f32
    # wc_ref:  (C, Op)    bf16 Wc^T (lane-padded)   bc_ref: (1, Op) f32
    # sel_ref: (C, H)     bf16 head selector   selt_ref: (H, C) bf16
    # o_ref:   (B, Op)    f32
    B, L, C = x_ref.shape
    S, Sp = seq_len, seq_pad
    H = sel_ref.shape[1]
    pad_rows = Sp - S

    x = x_ref[...]                                                     # (B,L,C) bf16
    pos = pos_ref[...]                                                 # (S,C)   bf16

    # ---- Batched token build: per image [mean; tokens] + pos, zero-padded to
    #      Sp rows so the (B, Sp, C) -> (B*Sp, C) collapse is sublane-aligned.
    mean = jnp.mean(x.astype(jnp.float32), axis=1, keepdims=True)      # (B,1,C) f32
    mean_bf = mean.astype(x.dtype)                                     # (B,1,C) bf16
    pieces = [mean_bf, x]
    tok = jnp.concatenate(pieces, axis=1) + pos[None]                  # (B,S,C) bf16
    if pad_rows:
        tok = jnp.concatenate(
            [tok, jnp.zeros((B, pad_rows, C), dtype=tok.dtype)], axis=1)
    tokens = tok.reshape(B * Sp, C)                                    # (B*Sp,C) bf16

    # ---- Q only for the B query rows (scale folded into wq/bq in the wrapper).
    q_tok = mean_bf[:, 0, :] + pos[0:1, :]                             # (B,C) bf16
    q = (jnp.dot(q_tok, wq_ref[...], preferred_element_type=jnp.float32)
         + bq_ref[...]).astype(jnp.bfloat16)                           # (B,C) bf16

    # ---- K / V over all token rows: big-M bf16 MXU matmuls, f32 accumulation,
    #      bf16 slabs right after the bias add.
    k = (jnp.dot(tokens, wk_ref[...], preferred_element_type=jnp.float32)
         + bk_ref[...]).astype(jnp.bfloat16)                           # (B*Sp,C)
    v = (jnp.dot(tokens, wv_ref[...], preferred_element_type=jnp.float32)
         + bv_ref[...]).astype(jnp.bfloat16)                           # (B*Sp,C)

    # ---- Per-head logits: s[b,l,h] = sum_{c in head h} k[b,l,c] * q[b,c]
    kq = (k.reshape(B, Sp, C) * q[:, None, :]).reshape(B * Sp, C)      # bf16
    s = jnp.dot(kq, sel_ref[...],
                preferred_element_type=jnp.float32).reshape(B, Sp, H)  # f32
    if pad_rows:
        valid = lax.broadcasted_iota(jnp.int32, (Sp, H), 0) < S        # (Sp,H)
        s = jnp.where(valid[None], s, -1e30)       # mask padded keys on f32 logits

    # ---- Softmax over the key axis (axis=1), per image & head, in f32.
    m = jnp.max(s, axis=1, keepdims=True)
    e = jnp.exp(s - m)
    p = e * pl.reciprocal(jnp.sum(e, axis=1, keepdims=True), approx=True)

    # ---- Broadcast per-head probs onto channels and reduce over keys.
    pc = jnp.dot(p.astype(jnp.bfloat16).reshape(B * Sp, H), selt_ref[...],
                 preferred_element_type=jnp.float32)                   # (B*Sp,C) f32
    attn = jnp.sum(pc.reshape(B, Sp, C) * v.reshape(B, Sp, C).astype(jnp.float32),
                   axis=1)                                             # (B,C) f32

    # ---- Output projection (lane-dense Op columns), batched over the tile.
    out = (jnp.dot(attn.astype(jnp.bfloat16), wc_ref[...],
                   preferred_element_type=jnp.float32) + bc_ref[...])  # (B,Op) f32
    o_ref[...] = out.astype(o_ref.dtype)


def attention_pool_2d(x_nchw, params, num_heads, *, batch_tile=None,
                      target_rows=None):
    """Forward pass of AttentionPool2d. x_nchw: (N, C, H, W) f32 -> (N, output_dim)."""
    N, C, Hh, Ww = x_nchw.shape
    L = Hh * Ww
    S = L + 1
    O = params["wc"].shape[0]
    assert C % num_heads == 0
    head_dim = C // num_heads
    H = num_heads

    Sp = _round_up(S, 8)       # sublane-aligned per-image token block
    Op = _round_up(O, 128)     # lane-dense output writeback

    vmem_cap = _vmem_capacity_bytes()
    if target_rows is None:
        target_rows = _default_target_rows()

    # Rough per-image / resident VMEM footprints (bytes) used for tile capping.
    resident_bytes = ((S * C + 3 * C * C + C * Op + 2 * C * H) * 2
                      + (3 * C + Op) * 4)
    per_image_bytes = Sp * C * 20 + 2 * L * C * 2 + 2 * Op * 4

    if batch_tile is None:
        batch_tile = max(1, min(N, pl.cdiv(target_rows, Sp)))
        budget = int(vmem_cap * 0.8) - resident_bytes - (4 << 20)
        if budget > 0:
            batch_tile = max(1, min(batch_tile, budget // max(per_image_bytes, 1)))
        # Prefer at least two grid steps so both v7x TensorCores get work.
        if batch_tile >= N and N >= 2:
            batch_tile = pl.cdiv(N, 2)
    grid_n = pl.cdiv(N, batch_tile)
    B = pl.cdiv(N, grid_n)
    Npad = grid_n * B

    # NCHW -> (N, L, C) token-major layout + bf16 cast (single relayout pass;
    # in a full model XLA fuses this with the producer of x).
    x_tok = jnp.transpose(x_nchw.reshape(N, C, L), (0, 2, 1)).astype(jnp.bfloat16)
    if Npad != N:
        x_tok = jnp.pad(x_tok, ((0, Npad - N), (0, 0), (0, 0)))

    scale = head_dim ** -0.5
    wq = (params["wq"].T * scale).astype(jnp.bfloat16)                  # (C, C)
    bq = (params["bq"] * scale).reshape(1, C).astype(jnp.float32)
    wk = params["wk"].T.astype(jnp.bfloat16)
    bk = params["bk"].reshape(1, C).astype(jnp.float32)
    wv = params["wv"].T.astype(jnp.bfloat16)
    bv = params["bv"].reshape(1, C).astype(jnp.float32)
    wc = jnp.pad(params["wc"].T, ((0, 0), (0, Op - O))).astype(jnp.bfloat16)  # (C, Op)
    bc = jnp.pad(params["bc"].reshape(1, O),
                 ((0, 0), (0, Op - O))).astype(jnp.float32)
    pos = params["pos"].astype(jnp.bfloat16)                            # (S, C)

    head_ids = jnp.arange(C, dtype=jnp.int32) // head_dim
    sel = (head_ids[:, None] ==
           jnp.arange(H, dtype=jnp.int32)[None, :]).astype(jnp.bfloat16)  # (C, H)
    sel_t = sel.T                                                        # (H, C)

    kernel = functools.partial(_attn_pool_kernel, seq_len=S, seq_pad=Sp)

    def _resident(shape):
        # Constant block index across the grid -> single-buffered resident VMEM.
        return pl.BlockSpec(shape, lambda g: (0,) * len(shape),
                            pipeline_mode=pl.Buffered(1))

    grid_spec = pltpu.PrefetchScalarGridSpec(
        num_scalar_prefetch=0,
        grid=(grid_n,),
        in_specs=[
            pl.BlockSpec((B, L, C), lambda g: (g, 0, 0)),   # streamed image tile
            _resident((S, C)),                              # positional embedding
            _resident((C, C)),                              # Wq^T * scale
            _resident((1, C)),                              # bq * scale
            _resident((C, C)),                              # Wk^T
            _resident((1, C)),                              # bk
            _resident((C, C)),                              # Wv^T
            _resident((1, C)),                              # bv
            _resident((C, Op)),                             # Wc^T (lane-padded)
            _resident((1, Op)),                             # bc
            _resident((C, H)),                              # head selector
            _resident((H, C)),                              # head selector^T
        ],
        out_specs=pl.BlockSpec((None, B, Op), lambda g: (g, 0, 0)),
    )

    # Explicit VMEM budget: residents + double-buffered streamed blocks +
    # in-kernel activation slabs + headroom, clamped to this generation's VMEM.
    streamed_bytes = 2 * (B * L * C * 2 + B * Op * 4)
    act_bytes = (B * Sp * C * 20 + 3 * B * Sp * max(H, 8) * 4
                 + B * (C * 12 + Op * 4))
    vmem_limit = int(min(
        max(resident_bytes + streamed_bytes + act_bytes + (4 << 20), 32 << 20),
        int(vmem_cap * 0.9)))

    out = pl.pallas_call(
        kernel,
        grid_spec=grid_spec,
        out_shape=jax.ShapeDtypeStruct((grid_n, B, Op), jnp.float32),
        compiler_params=pltpu.CompilerParams(
            dimension_semantics=("parallel",),
            vmem_limit_bytes=vmem_limit),
    )(x_tok, pos, wq, bq, wk, bk, wv, bv, wc, bc, sel, sel_t)

    return out.reshape(Npad, Op)[:N, :O]


def attention_pool_2d_reference(x_nchw, params, num_heads):
    """Pure-JAX f32 reference mirroring F.multi_head_attention_forward semantics."""
    N, C, H, W = x_nchw.shape
    L = H * W
    head_dim = C // num_heads
    O = params["wc"].shape[0]

    x = jnp.transpose(x_nchw.reshape(N, C, L), (0, 2, 1))            # (N, L, C)
    tokens = jnp.concatenate([jnp.mean(x, axis=1, keepdims=True), x], axis=1)
    tokens = tokens + params["pos"][None, :, :]                      # (N, S, C)

    q = tokens[:, :1, :] @ params["wq"].T + params["bq"]
    k = tokens @ params["wk"].T + params["bk"]
    v = tokens @ params["wv"].T + params["bv"]

    q = q.reshape(N, 1, num_heads, head_dim) * (head_dim ** -0.5)
    k = k.reshape(N, -1, num_heads, head_dim)
    v = v.reshape(N, -1, num_heads, head_dim)

    logits = jnp.einsum("nqhd,nkhd->nhqk", q, k)
    probs = jax.nn.softmax(logits, axis=-1)
    out = jnp.einsum("nhqk,nkhd->nqhd", probs, v).reshape(N, 1, C)
    out = out @ params["wc"].T + params["bc"]
    return out[:, 0, :].reshape(N, O)


def init_params(key, spacial_dim, embed_dim, output_dim):
    ks = jax.random.split(key, 9)
    S = spacial_dim ** 2 + 1
    scale = 0.1
    return {
        "pos": jax.random.normal(ks[0], (S, embed_dim), jnp.float32) / embed_dim ** 0.5,
        "wq": scale * jax.random.normal(ks[1], (embed_dim, embed_dim), jnp.float32),
        "bq": scale * jax.random.normal(ks[2], (embed_dim,), jnp.float32),
        "wk": scale * jax.random.normal(ks[3], (embed_dim, embed_dim), jnp.float32),
        "bk": scale * jax.random.normal(ks[4], (embed_dim,), jnp.float32),
        "wv": scale * jax.random.normal(ks[5], (embed_dim, embed_dim), jnp.float32),
        "bv": scale * jax.random.normal(ks[6], (embed_dim,), jnp.float32),
        "wc": scale * jax.random.normal(ks[7], (output_dim, embed_dim), jnp.float32),
        "bc": scale * jax.random.normal(ks[8], (output_dim,), jnp.float32),
    }


if __name__ == "__main__":
    # Small, module-consistent shapes: batch=5, embed_dim=32, spacial_dim=4 (L=16),
    # num_heads=4 (head_dim=8), output_dim=16.
    N, C, SP, NH, OD = 5, 32, 4, 4, 16

    key = jax.random.PRNGKey(0)
    kx, kp = jax.random.split(key)
    x = jax.random.normal(kx, (N, C, SP, SP), jnp.float32)   # NCHW, like PyTorch
    params = init_params(kp, SP, C, OD)

    ref = jax.block_until_ready(attention_pool_2d_reference(x, params, NH))

    # 1) auto batch tile: generation-aware M target, split so grid_n >= 2
    out1 = jax.block_until_ready(attention_pool_2d(x, params, NH))
    # 2) forced small tile: ragged batch (exercises batch padding and the
    #    Buffered(1)-resident weights across several grid steps)
    out2 = jax.block_until_ready(attention_pool_2d(x, params, NH, batch_tile=2))

    assert out1.shape == (N, OD) and out2.shape == (N, OD)
    np.testing.assert_allclose(np.asarray(out1), np.asarray(ref), rtol=2e-2, atol=2e-2)
    np.testing.assert_allclose(np.asarray(out2), np.asarray(ref), rtol=2e-2, atol=2e-2)

    print("KERNEL_OK")
</pallas_src>

<mosaic_0001>
module attributes {stable_mosaic.version = 11 : i64} {
  func.func @_attn_pool_kernel(%arg0: i32, %arg1: memref<3x16x32xbf16, #tpu.memory_space<vmem>>, %arg2: memref<17x32xbf16, #tpu.memory_space<vmem>>, %arg3: memref<32x32xbf16, #tpu.memory_space<vmem>>, %arg4: memref<1x32xf32, #tpu.memory_space<vmem>>, %arg5: memref<32x32xbf16, #tpu.memory_space<vmem>>, %arg6: memref<1x32xf32, #tpu.memory_space<vmem>>, %arg7: memref<32x32xbf16, #tpu.memory_space<vmem>>, %arg8: memref<1x32xf32, #tpu.memory_space<vmem>>, %arg9: memref<32x128xbf16, #tpu.memory_space<vmem>>, %arg10: memref<1x128xf32, #tpu.memory_space<vmem>>, %arg11: memref<32x4xbf16, #tpu.memory_space<vmem>>, %arg12: memref<4x32xbf16, #tpu.memory_space<vmem>>, %arg13: memref<1x3x128xf32, #tpu.memory_space<vmem>>) attributes {dimension_semantics = [#tpu.dimension_semantics<parallel>], iteration_bounds = array<i64: 2>, scalar_prefetch = 0 : i64, scratch_operands = 0 : i64, tpu.core_type = #tpu.core_type<tc>, window_params = [{transform_indices = @transform_0, window_bounds = array<i64: 3, 16, 32>}, {pipeline_mode = #tpu.pipeline_mode<synchronous>, transform_indices = @transform_1, window_bounds = array<i64: 17, 32>}, {pipeline_mode = #tpu.pipeline_mode<synchronous>, transform_indices = @transform_2, window_bounds = array<i64: 32, 32>}, {pipeline_mode = #tpu.pipeline_mode<synchronous>, transform_indices = @transform_3, window_bounds = array<i64: 1, 32>}, {pipeline_mode = #tpu.pipeline_mode<synchronous>, transform_indices = @transform_4, window_bounds = array<i64: 32, 32>}, {pipeline_mode = #tpu.pipeline_mode<synchronous>, transform_indices = @transform_5, window_bounds = array<i64: 1, 32>}, {pipeline_mode = #tpu.pipeline_mode<synchronous>, transform_indices = @transform_6, window_bounds = array<i64: 32, 32>}, {pipeline_mode = #tpu.pipeline_mode<synchronous>, transform_indices = @transform_7, window_bounds = array<i64: 1, 32>}, {pipeline_mode = #tpu.pipeline_mode<synchronous>, transform_indices = @transform_8, window_bounds = array<i64: 32, 128>}, {pipeline_mode = #tpu.pipeline_mode<synchronous>, transform_indices = @transform_9, window_bounds = array<i64: 1, 128>}, {pipeline_mode = #tpu.pipeline_mode<synchronous>, transform_indices = @transform_10, window_bounds = array<i64: 32, 4>}, {pipeline_mode = #tpu.pipeline_mode<synchronous>, transform_indices = @transform_11, window_bounds = array<i64: 4, 32>}, {transform_indices = @transform_12, window_bounds = array<i64: 1, 3, 128>}]} {
    %c0 = arith.constant 0 : index
    %c0_0 = arith.constant 0 : index
    %c0_1 = arith.constant 0 : index
    %0 = vector.load %arg1[%c0, %c0_0, %c0_1] : memref<3x16x32xbf16, #tpu.memory_space<vmem>>, vector<3x16x32xbf16>
    %c0_2 = arith.constant 0 : index
    %c0_3 = arith.constant 0 : index
    %1 = vector.load %arg2[%c0_2, %c0_3] : memref<17x32xbf16, #tpu.memory_space<vmem>>, vector<17x32xbf16>
    %2 = arith.extf %0 : vector<3x16x32xbf16> to vector<3x16x32xf32>
    %cst = arith.constant dense<0.000000e+00> : vector<3x32xf32>
    %3 = vector.multi_reduction <add>, %2, %cst [1] : vector<3x16x32xf32> to vector<3x32xf32>
    %4 = vector.shape_cast %3 : vector<3x32xf32> to vector<3x1x32xf32>
    %cst_4 = arith.constant 1.600000e+01 : f32
    %5 = vector.broadcast %cst_4 : f32 to vector<3x1x32xf32>
    %6 = arith.divf %4, %5 : vector<3x1x32xf32>
    %7 = arith.truncf %6 : vector<3x1x32xf32> to vector<3x1x32xbf16>
    %8 = tpu.concatenate %7, %0 in 1 : vector<3x1x32xbf16>, vector<3x16x32xbf16> -> vector<3x17x32xbf16>
    %9 = vector.shape_cast %1 : vector<17x32xbf16> to vector<1x17x32xbf16>
    %10 = vector.broadcast %9 : vector<1x17x32xbf16> to vector<3x17x32xbf16>
    %11 = arith.addf %8, %10 : vector<3x17x32xbf16>
    %cst_5 = arith.constant 0.000000e+00 : bf16
    %12 = vector.broadcast %cst_5 : bf16 to vector<3x7x32xbf16>
    %13 = tpu.concatenate %11, %12 in 1 : vector<3x17x32xbf16>, vector<3x7x32xbf16> -> vector<3x24x32xbf16>
    %14 = vector.shape_cast %13 : vector<3x24x32xbf16> to vector<72x32xbf16>
    %15 = vector.shape_cast %7 : vector<3x1x32xbf16> to vector<3x32xbf16>
    %16 = vector.extract_strided_slice %1 {offsets = [0, 0], sizes = [1, 32], strides = [1, 1]} : vector<17x32xbf16> to vector<1x32xbf16>
    %17 = vector.broadcast %16 : vector<1x32xbf16> to vector<3x32xbf16>
    %18 = arith.addf %15, %17 : vector<3x32xbf16>
    %c0_6 = arith.constant 0 : index
    %c0_7 = arith.constant 0 : index
    %19 = vector.load %arg3[%c0_6, %c0_7] : memref<32x32xbf16, #tpu.memory_space<vmem>>, vector<32x32xbf16>
    %cst_8 = arith.constant dense<0.000000e+00> : vector<3x32xf32>
    %20 = tpu.matmul %18, %19, %cst_8 {dimension_numbers = #tpu.dot_dimension_numbers<[1], [0], [0], [1], [0, 0, 1, 1], [], []>} : vector<3x32xbf16>, vector<32x32xbf16>, vector<3x32xf32> -> vector<3x32xf32>
    %c0_9 = arith.constant 0 : index
    %c0_10 = arith.constant 0 : index
    %21 = vector.load %arg4[%c0_9, %c0_10] : memref<1x32xf32, #tpu.memory_space<vmem>>, vector<1x32xf32>
    %22 = vector.broadcast %21 : vector<1x32xf32> to vector<3x32xf32>
    %23 = arith.addf %20, %22 : vector<3x32xf32>
    %24 = arith.truncf %23 : vector<3x32xf32> to vector<3x32xbf16>
    %c0_11 = arith.constant 0 : index
    %c0_12 = arith.constant 0 : index
    %25 = vector.load %arg5[%c0_11, %c0_12] : memref<32x32xbf16, #tpu.memory_space<vmem>>, vector<32x32xbf16>
    %cst_13 = arith.constant dense<0.000000e+00> : vector<72x32xf32>
    %26 = tpu.matmul %14, %25, %cst_13 {dimension_numbers = #tpu.dot_dimension_numbers<[1], [0], [0], [1], [0, 0, 1, 1], [], []>} : vector<72x32xbf16>, vector<32x32xbf16>, vector<72x32xf32> -> vector<72x32xf32>
    %c0_14 = arith.constant 0 : index
    %c0_15 = arith.constant 0 : index
    %27 = vector.load %arg6[%c0_14, %c0_15] : memref<1x32xf32, #tpu.memory_space<vmem>>, vector<1x32xf32>
    %28 = vector.broadcast %27 : vector<1x32xf32> to vector<72x32xf32>
    %29 = arith.addf %26, %28 : vector<72x32xf32>
    %30 = arith.truncf %29 : vector<72x32xf32> to vector<72x32xbf16>
    %c0_16 = arith.constant 0 : index
    %c0_17 = arith.constant 0 : index
    %31 = vector.load %arg7[%c0_16, %c0_17] : memref<32x32xbf16, #tpu.memory_space<vmem>>, vector<32x32xbf16>
    %cst_18 = arith.constant dense<0.000000e+00> : vector<72x32xf32>
    %32 = tpu.matmul %14, %31, %cst_18 {dimension_numbers = #tpu.dot_dimension_numbers<[1], [0], [0], [1], [0, 0, 1, 1], [], []>} : vector<72x32xbf16>, vector<32x32xbf16>, vector<72x32xf32> -> vector<72x32xf32>
    %c0_19 = arith.constant 0 : index
    %c0_20 = arith.constant 0 : index
    %33 = vector.load %arg8[%c0_19, %c0_20] : memref<1x32xf32, #tpu.memory_space<vmem>>, vector<1x32xf32>
    %34 = vector.broadcast %33 : vector<1x32xf32> to vector<72x32xf32>
    %35 = arith.addf %32, %34 : vector<72x32xf32>
    %36 = arith.truncf %35 : vector<72x32xf32> to vector<72x32xbf16>
    %37 = vector.shape_cast %30 : vector<72x32xbf16> to vector<3x24x32xbf16>
    %38 = vector.shape_cast %24 : vector<3x32xbf16> to vector<3x1x32xbf16>
    %39 = vector.broadcast %38 : vector<3x1x32xbf16> to vector<3x24x32xbf16>
    %40 = arith.mulf %37, %39 : vector<3x24x32xbf16>
    %41 = vector.shape_cast %40 : vector<3x24x32xbf16> to vector<72x32xbf16>
    %c0_21 = arith.constant 0 : index
    %c0_22 = arith.constant 0 : index
    %42 = vector.load %arg11[%c0_21, %c0_22] : memref<32x4xbf16, #tpu.memory_space<vmem>>, vector<32x4xbf16>
    %cst_23 = arith.constant dense<0.000000e+00> : vector<72x4xf32>
    %43 = tpu.matmul %41, %42, %cst_23 {dimension_numbers = #tpu.dot_dimension_numbers<[1], [0], [0], [1], [0, 0, 1, 1], [], []>} : vector<72x32xbf16>, vector<32x4xbf16>, vector<72x4xf32> -> vector<72x4xf32>
    %44 = vector.shape_cast %43 : vector<72x4xf32> to vector<3x24x4xf32>
    %45 = tpu.iota {dimensions = array<i32: 0>} : vector<24x4xi32>
    %c17_i32 = arith.constant 17 : i32
    %46 = vector.broadcast %c17_i32 : i32 to vector<24x4xi32>
    %47 = arith.cmpi slt, %45, %46 : vector<24x4xi32>
    %48 = vector.shape_cast %47 : vector<24x4xi1> to vector<1x24x4xi1>
    %cst_24 = arith.constant -1.000000e+30 : f32
    %49 = vector.shape_cast %48 : vector<1x24x4xi1> to vector<1x24x4xi1>
    %50 = vector.broadcast %49 : vector<1x24x4xi1> to vector<3x24x4xi1>
    %51 = vector.broadcast %cst_24 : f32 to vector<3x24x4xf32>
    %52 = arith.select %50, %44, %51 : vector<3x24x4xi1>, vector<3x24x4xf32>
    %cst_25 = arith.constant dense<0xFF800000> : vector<3x4xf32>
    %53 = vector.multi_reduction <maximumf>, %52, %cst_25 [1] : vector<3x24x4xf32> to vector<3x4xf32>
    %54 = vector.shape_cast %53 : vector<3x4xf32> to vector<3x1x4xf32>
    %55 = vector.broadcast %54 : vector<3x1x4xf32> to vector<3x24x4xf32>
    %56 = arith.subf %52, %55 : vector<3x24x4xf32>
    %57 = math.exp %56 : vector<3x24x4xf32>
    %cst_26 = arith.constant dense<0.000000e+00> : vector<3x4xf32>
    %58 = vector.multi_reduction <add>, %57, %cst_26 [1] : vector<3x24x4xf32> to vector<3x4xf32>
    %59 = vector.shape_cast %58 : vector<3x4xf32> to vector<3x1x4xf32>
    %60 = tpu.reciprocal %59 {approx = true} : vector<3x1x4xf32> -> vector<3x1x4xf32>
    %61 = vector.broadcast %60 : vector<3x1x4xf32> to vector<3x24x4xf32>
    %62 = arith.mulf %57, %61 : vector<3x24x4xf32>
    %63 = arith.truncf %62 : vector<3x24x4xf32> to vector<3x24x4xbf16>
    %64 = vector.shape_cast %63 : vector<3x24x4xbf16> to vector<72x4xbf16>
    %c0_27 = arith.constant 0 : index
    %c0_28 = arith.constant 0 : index
    %65 = vector.load %arg12[%c0_27, %c0_28] : memref<4x32xbf16, #tpu.memory_space<vmem>>, vector<4x32xbf16>
    %cst_29 = arith.constant dense<0.000000e+00> : vector<72x32xf32>
    %66 = tpu.matmul %64, %65, %cst_29 {dimension_numbers = #tpu.dot_dimension_numbers<[1], [0], [0], [1], [0, 0, 1, 1], [], []>} : vector<72x4xbf16>, vector<4x32xbf16>, vector<72x32xf32> -> vector<72x32xf32>
    %67 = vector.shape_cast %66 : vector<72x32xf32> to vector<3x24x32xf32>
    %68 = vector.shape_cast %36 : vector<72x32xbf16> to vector<3x24x32xbf16>
    %69 = arith.extf %68 : vector<3x24x32xbf16> to vector<3x24x32xf32>
    %70 = arith.mulf %67, %69 : vector<3x24x32xf32>
    %cst_30 = arith.constant dense<0.000000e+00> : vector<3x32xf32>
    %71 = vector.multi_reduction <add>, %70, %cst_30 [1] : vector<3x24x32xf32> to vector<3x32xf32>
    %72 = arith.truncf %71 : vector<3x32xf32> to vector<3x32xbf16>
    %c0_31 = arith.constant 0 : index
    %c0_32 = arith.constant 0 : index
    %73 = vector.load %arg9[%c0_31, %c0_32] : memref<32x128xbf16, #tpu.memory_space<vmem>>, vector<32x128xbf16>
    %cst_33 = arith.constant dense<0.000000e+00> : vector<3x128xf32>
    %74 = tpu.matmul %72, %73, %cst_33 {dimension_numbers = #tpu.dot_dimension_numbers<[1], [0], [0], [1], [0, 0, 1, 1], [], []>} : vector<3x32xbf16>, vector<32x128xbf16>, vector<3x128xf32> -> vector<3x128xf32>
    %c0_34 = arith.constant 0 : index
    %c0_35 = arith.constant 0 : index
    %75 = vector.load %arg10[%c0_34, %c0_35] : memref<1x128xf32, #tpu.memory_space<vmem>>, vector<1x128xf32>
    %76 = vector.broadcast %75 : vector<1x128xf32> to vector<3x128xf32>
    %77 = arith.addf %74, %76 : vector<3x128xf32>
    %c0_36 = arith.constant 0 : index
    %c0_37 = arith.constant 0 : index
    %c0_38 = arith.constant 0 : index
    %78 = vector.load %arg13[%c0_36, %c0_37, %c0_38] : memref<1x3x128xf32, #tpu.memory_space<vmem>>, vector<1x3x128xf32>
    %79 = vector.shape_cast %78 : vector<1x3x128xf32> to vector<3x128xf32>
    %80 = vector.shape_cast %77 : vector<3x128xf32> to vector<1x3x128xf32>
    tpu.vector_store %arg13[%c0_36, %c0_37, %c0_38], %80 {strides = array<i32>} : memref<1x3x128xf32, #tpu.memory_space<vmem>>, vector<1x3x128xf32>,
    return
  }
  func.func @transform_0(%arg0: i32) -> (i32, i32, i32) {
    %c0_i32 = arith.constant 0 : i32
    %c0_i32_0 = arith.constant 0 : i32
    %c0_i32_1 = arith.constant 0 : i32
    return %arg0, %c0_i32, %c0_i32_0 : i32, i32, i32
  }
  func.func @transform_1(%arg0: i32) -> (i32, i32) {
    %c0_i32 = arith.constant 0 : i32
    %c0_i32_0 = arith.constant 0 : i32
    %c0_i32_1 = arith.constant 0 : i32
    return %c0_i32, %c0_i32_0 : i32, i32
  }
  func.func @transform_2(%arg0: i32) -> (i32, i32) {
    %c0_i32 = arith.constant 0 : i32
    %c0_i32_0 = arith.constant 0 : i32
    %c0_i32_1 = arith.constant 0 : i32
    return %c0_i32, %c0_i32_0 : i32, i32
  }
  func.func @transform_3(%arg0: i32) -> (i32, i32) {
    %c0_i32 = arith.constant 0 : i32
    %c0_i32_0 = arith.constant 0 : i32
    %c0_i32_1 = arith.constant 0 : i32
    return %c0_i32, %c0_i32_0 : i32, i32
  }
  func.func @transform_4(%arg0: i32) -> (i32, i32) {
    %c0_i32 = arith.constant 0 : i32
    %c0_i32_0 = arith.constant 0 : i32
    %c0_i32_1 = arith.constant 0 : i32
    return %c0_i32, %c0_i32_0 : i32, i32
  }
  func.func @transform_5(%arg0: i32) -> (i32, i32) {
    %c0_i32 = arith.constant 0 : i32
    %c0_i32_0 = arith.constant 0 : i32
    %c0_i32_1 = arith.constant 0 : i32
    return %c0_i32, %c0_i32_0 : i32, i32
  }
  func.func @transform_6(%arg0: i32) -> (i32, i32) {
    %c0_i32 = arith.constant 0 : i32
    %c0_i32_0 = arith.constant 0 : i32
    %c0_i32_1 = arith.constant 0 : i32
    return %c0_i32, %c0_i32_0 : i32, i32
  }
  func.func @transform_7(%arg0: i32) -> (i32, i32) {
    %c0_i32 = arith.constant 0 : i32
    %c0_i32_0 = arith.constant 0 : i32
    %c0_i32_1 = arith.constant 0 : i32
    return %c0_i32, %c0_i32_0 : i32, i32
  }
  func.func @transform_8(%arg0: i32) -> (i32, i32) {
    %c0_i32 = arith.constant 0 : i32
    %c0_i32_0 = arith.constant 0 : i32
    %c0_i32_1 = arith.constant 0 : i32
    return %c0_i32, %c0_i32_0 : i32, i32
  }
  func.func @transform_9(%arg0: i32) -> (i32, i32) {
    %c0_i32 = arith.constant 0 : i32
    %c0_i32_0 = arith.constant 0 : i32
    %c0_i32_1 = arith.constant 0 : i32
    return %c0_i32, %c0_i32_0 : i32, i32
  }
  func.func @transform_10(%arg0: i32) -> (i32, i32) {
    %c0_i32 = arith.constant 0 : i32
    %c0_i32_0 = arith.constant 0 : i32
    %c0_i32_1 = arith.constant 0 : i32
    return %c0_i32, %c0_i32_0 : i32, i32
  }
  func.func @transform_11(%arg0: i32) -> (i32, i32) {
    %c0_i32 = arith.constant 0 : i32
    %c0_i32_0 = arith.constant 0 : i32
    %c0_i32_1 = arith.constant 0 : i32
    return %c0_i32, %c0_i32_0 : i32, i32
  }
  func.func @transform_12(%arg0: i32) -> (i32, i32, i32) {
    %c0_i32 = arith.constant 0 : i32
    %c0_i32_0 = arith.constant 0 : i32
    %c0_i32_1 = arith.constant 0 : i32
    return %arg0, %c0_i32, %c0_i32_0 : i32, i32, i32
  }
}

</mosaic_0001>

<llo_original>
// kernel: tpu_custom_call.1
$region0: #{tpu_custom_call.1}
  #allocation0 [shape = 'u32[]', space=smem, size = 0x4, offset = 0x4, fixed_abs, tag = 'smem constant byte address 0x4 - core index']
  #allocation1 [shape = 'u32[72,128]{1,0:T(1,128)}', space=vmem, size = 0x9000, scoped, tag = 'internal scratch']
  %s0 = inlined_call_operand.hbm [shape: bf16[6,16,32], index: 0, kind: input, shape index: {}]
  %s1 = inlined_call_operand.hbm [shape: bf16[17,32], index: 1, kind: input, shape index: {}]
  %s2 = inlined_call_operand.vmem [shape: bf16[32,32], index: 2, kind: input, shape index: {}]
  %s3 = inlined_call_operand.vmem [shape: f32[1,32], index: 3, kind: input, shape index: {}]
  %s4 = inlined_call_operand.hbm [shape: bf16[32,32], index: 4, kind: input, shape index: {}]
  %s5 = inlined_call_operand.vmem [shape: f32[1,32], index: 5, kind: input, shape index: {}]
  %s6 = inlined_call_operand.hbm [shape: bf16[32,32], index: 6, kind: input, shape index: {}]
  %s7 = inlined_call_operand.vmem [shape: f32[1,32], index: 7, kind: input, shape index: {}]
  %s8 = inlined_call_operand.hbm [shape: bf16[32,128], index: 8, kind: input, shape index: {}]
  %s9 = inlined_call_operand.vmem [shape: f32[1,128], index: 9, kind: input, shape index: {}]
  %s10 = inlined_call_operand.vmem [shape: bf16[32,4], index: 10, kind: input, shape index: {}]
  %s11 = inlined_call_operand.vmem [shape: bf16[4,32], index: 11, kind: input, shape index: {}]
  %s12 = inlined_call_operand.vmem [shape: f32[2,3,128], index: 12, kind: output, shape index: {}]
  %s13 = sld [smem:[#allocation0]]
  $region101: #{tpu_custom_call.1} parent=0
    _
  %s15 = ssub.s32 1, %s13
  %s16 = scalar_select 0, %s15, %s13
  $region1: #{tpu_custom_call.1} parent=0
    #allocation2 [shape = 'u8[24576]{0}', space=vmem, size = 0x6000, scoped, tag = 'input window, operand 0']
    #allocation3 [shape = 's32[2]{0}', space=sflag, size = 0x8, scoped, tag = 'scoped memory for tpu_custom_call.1']
    #allocation4 [shape = 'u8[6144]{0}', space=vmem, size = 0x1800, scoped, tag = 'input window, operand 1, single buffered']
    #allocation5 [shape = 's32[1]{0}', space=sflag, size = 0x4, scoped, tag = 'scoped memory for tpu_custom_call.1']
    #allocation6 [shape = 'u8[8192]{0}', space=vmem, size = 0x2000, scoped, tag = 'input window, operand 4, single buffered']
    #allocation7 [shape = 'u8[8192]{0}', space=vmem, size = 0x2000, scoped, tag = 'input window, operand 6, single buffered']
    #allocation8 [shape = 's32[1]{0}', space=sflag, size = 0x4, scoped, tag = 'scoped memory for tpu_custom_call.1']
    #allocation9 [shape = 'u8[8192]{0}', space=vmem, size = 0x2000, scoped, tag = 'input window, operand 8, single buffered']
    %17 = vsyncpa [#allocation3], 0
    %s18 = scalar_lea.sflag [#allocation3], 1
    %19 = vsyncpa %s18, 0
    %20 = vsyncpa [#allocation5], 0
    %21 = vsyncpa [#allocation8], 0
    loop: start=0, step=1, limit=4
    $region2: #{tpu_custom_call.1} parent=1 // loop_pre_header
      _
    $region3: #{tpu_custom_call.1} parent=1 // loop_header
      %s23 = sphi 0, %s27
      %p24 = scmp.ge.s32.totalorder %s23, 4
      %s33 = sphi 0, %s35
      %s36 = sphi 0, %s33
      %s37 = sphi 0, %s36
      %s53 = sphi 0, %s37
      %s57 = sphi 0, %s57
      %s59 = sphi 0, %s57
      %s60 = sphi 0, %s59
      %s74 = sphi 0, %s60
      %s78 = sphi 0, %s78
      %s80 = sphi 0, %s78
      %s81 = sphi 0, %s80
      %s95 = sphi 0, %s81
      %s99 = sphi 0, %s99
      %s101 = sphi 0, %s99
      %s102 = sphi 0, %s101
      %s116 = sphi 0, %s102
      %s120 = sphi 0, %s120
      %s122 = sphi 0, %s120
      %s123 = sphi 0, %s122
      %s137 = sphi 0, %s123
      %s141 = sphi 0, %s141
      %s143 = sphi 0, %s141
      %s144 = sphi 0, %s143
      %s158 = sphi 0, %s144
      %s162 = sphi 0, %s162
      %s164 = sphi 0, %s162
      %s165 = sphi 0, %s164
      %s179 = sphi 0, %s165
      %s183 = sphi 0, %s183
      %s185 = sphi 0, %s183
      %s186 = sphi 0, %s185
      %s200 = sphi 0, %s186
      %s204 = sphi 0, %s204
      %s206 = sphi 0, %s204
      %s207 = sphi 0, %s206
      %s221 = sphi 0, %s207
      %s225 = sphi 0, %s225
      %s227 = sphi 0, %s225
      %s228 = sphi 0, %s227
      %s242 = sphi 0, %s228
      %s246 = sphi 0, %s246
      %s248 = sphi 0, %s246
      %s249 = sphi 0, %s248
      %s263 = sphi 0, %s249
      %s267 = sphi 0, %s267
      %s269 = sphi 0, %s267
      %s270 = sphi 0, %s269
      %s284 = sphi 0, %s270
      %s290 = sphi 0, %s292
      %s293 = sphi 0, %s290
      %s294 = sphi 0, %s293
      %s310 = sphi 0, %s294
    $region4: #{tpu_custom_call.1} parent=1 // loop_header_branch
      %26 = sbr.rel (%p24) target = $region8
    $region5: #{tpu_custom_call.1} parent=1 // loop_body
      %s28 = ssub.s32 %s23, 1
      %s29 = ssub.s32 %s23, 2
      %s30 = sadd.s32 %s23, 1
      %s31 = ssub.s32 %s23, %s30
      %p32 = scmp.eq.s32.totalorder %s31, 0
      %s34 = sadd.s32 %s33, 1
      %s35 = scalar_select %p32, %s33, %s34
      %p38 = pneg %p32
      %p39 = scmp.eq.s32.totalorder %s23, 1
      %p40 = por %p38, %p39
      %p41 = scmp.ne.s32.totalorder %s33, %s36
      %p42 = scmp.eq.s32.totalorder %s23, 0
      %p43 = por %p41, %p42
      %p44 = scmp.ne.s32.totalorder %s33, %s36
      %p45 = scmp.eq.s32.totalorder %s28, 1
      %p46 = por %p44, %p45
      %p47 = scmp.ne.s32.totalorder %s36, %s37
      %p48 = scmp.eq.s32.totalorder %s28, 0
      %p49 = por %p47, %p48
      %p50 = scmp.ne.s32.totalorder %s36, %s37
      %p51 = scmp.eq.s32.totalorder %s29, 1
      %p52 = por %p50, %p51
      %p54 = scmp.ne.s32.totalorder %s37, %s53
      %p55 = scmp.eq.s32.totalorder %s29, 0
      %p56 = por %p54, %p55
      %s58 = sadd.s32 %s57, 1
      %p61 = scmp.eq.s32.totalorder %s23, 1
      %p62 = scmp.ne.s32.totalorder %s57, %s59
      %p63 = scmp.eq.s32.totalorder %s23, 0
      %p64 = por %p62, %p63
      %p65 = scmp.ne.s32.totalorder %s57, %s59
      %p66 = scmp.eq.s32.totalorder %s28, 1
      %p67 = por %p65, %p66
      %p68 = scmp.ne.s32.totalorder %s59, %s60
      %p69 = scmp.eq.s32.totalorder %s28, 0
      %p70 = por %p68, %p69
      %p71 = scmp.ne.s32.totalorder %s59, %s60
      %p72 = scmp.eq.s32.totalorder %s29, 1
      %p73 = por %p71, %p72
      %p75 = scmp.ne.s32.totalorder %s60, %s74
      %p76 = scmp.eq.s32.totalorder %s29, 0
      %p77 = por %p75, %p76
      %s79 = sadd.s32 %s78, 1
      %p82 = scmp.eq.s32.totalorder %s23, 1
      %p83 = scmp.ne.s32.totalorder %s78, %s80
      %p84 = scmp.eq.s32.totalorder %s23, 0
      %p85 = por %p83, %p84
      %p86 = scmp.ne.s32.totalorder %s78, %s80
      %p87 = scmp.eq.s32.totalorder %s28, 1
      %p88 = por %p86, %p87
      %p89 = scmp.ne.s32.totalorder %s80, %s81
      %p90 = scmp.eq.s32.totalorder %s28, 0
      %p91 = por %p89, %p90
      %p92 = scmp.ne.s32.totalorder %s80, %s81
      %p93 = scmp.eq.s32.totalorder %s29, 1
      %p94 = por %p92, %p93
      %p96 = scmp.ne.s32.totalorder %s81, %s95
      %p97 = scmp.eq.s32.totalorder %s29, 0
      %p98 = por %p96, %p97
      %s100 = sadd.s32 %s99, 1
      %p103 = scmp.eq.s32.totalorder %s23, 1
      %p104 = scmp.ne.s32.totalorder %s99, %s101
      %p105 = scmp.eq.s32.totalorder %s23, 0
      %p106 = por %p104, %p105
      %p107 = scmp.ne.s32.totalorder %s99, %s101
      %p108 = scmp.eq.s32.totalorder %s28, 1
      %p109 = por %p107, %p108
      %p110 = scmp.ne.s32.totalorder %s101, %s102
      %p111 = scmp.eq.s32.totalorder %s28, 0
      %p112 = por %p110, %p111
      %p113 = scmp.ne.s32.totalorder %s101, %s102
      %p114 = scmp.eq.s32.totalorder %s29, 1
      %p115 = por %p113, %p114
      %p117 = scmp.ne.s32.totalorder %s102, %s116
      %p118 = scmp.eq.s32.totalorder %s29, 0
      %p119 = por %p117, %p118
      %s121 = sadd.s32 %s120, 1
      %p124 = scmp.eq.s32.totalorder %s23, 1
      %p125 = scmp.ne.s32.totalorder %s120, %s122
      %p126 = scmp.eq.s32.totalorder %s23, 0
      %p127 = por %p125, %p126
      %p128 = scmp.ne.s32.totalorder %s120, %s122
      %p129 = scmp.eq.s32.totalorder %s28, 1
      %p130 = por %p128, %p129
      %p131 = scmp.ne.s32.totalorder %s122, %s123
      %p132 = scmp.eq.s32.totalorder %s28, 0
      %p133 = por %p131, %p132
      %p134 = scmp.ne.s32.totalorder %s122, %s123
      %p135 = scmp.eq.s32.totalorder %s29, 1
      %p136 = por %p134, %p135
      %p138 = scmp.ne.s32.totalorder %s123, %s137
      %p139 = scmp.eq.s32.totalorder %s29, 0
      %p140 = por %p138, %p139
      %s142 = sadd.s32 %s141, 1
      %p145 = scmp.eq.s32.totalorder %s23, 1
      %p146 = scmp.ne.s32.totalorder %s141, %s143
      %p147 = scmp.eq.s32.totalorder %s23, 0
      %p148 = por %p146, %p147
      %p149 = scmp.ne.s32.totalorder %s141, %s143
      %p150 = scmp.eq.s32.totalorder %s28, 1
      %p151 = por %p149, %p150
      %p152 = scmp.ne.s32.totalorder %s143, %s144
      %p153 = scmp.eq.s32.totalorder %s28, 0
      %p154 = por %p152, %p153
      %p155 = scmp.ne.s32.totalorder %s143, %s144
      %p156 = scmp.eq.s32.totalorder %s29, 1
      %p157 = por %p155, %p156
      %p159 = scmp.ne.s32.totalorder %s144, %s158
      %p160 = scmp.eq.s32.totalorder %s29, 0
      %p161 = por %p159, %p160
      %s163 = sadd.s32 %s162, 1
      %p166 = scmp.eq.s32.totalorder %s23, 1
      %p167 = scmp.ne.s32.totalorder %s162, %s164
      %p168 = scmp.eq.s32.totalorder %s23, 0
      %p169 = por %p167, %p168
      %p170 = scmp.ne.s32.totalorder %s162, %s164
      %p171 = scmp.eq.s32.totalorder %s28, 1
      %p172 = por %p170, %p171
      %p173 = scmp.ne.s32.totalorder %s164, %s165
      %p174 = scmp.eq.s32.totalorder %s28, 0
      %p175 = por %p173, %p174
      %p176 = scmp.ne.s32.totalorder %s164, %s165
      %p177 = scmp.eq.s32.totalorder %s29, 1
      %p178 = por %p176, %p177
      %p180 = scmp.ne.s32.totalorder %s165, %s179
      %p181 = scmp.eq.s32.totalorder %s29, 0
      %p182 = por %p180, %p181
      %s184 = sadd.s32 %s183, 1
      %p187 = scmp.eq.s32.totalorder %s23, 1
      %p188 = scmp.ne.s32.totalorder %s183, %s185
      %p189 = scmp.eq.s32.totalorder %s23, 0
      %p190 = por %p188, %p189
      %p191 = scmp.ne.s32.totalorder %s183, %s185
      %p192 = scmp.eq.s32.totalorder %s28, 1
      %p193 = por %p191, %p192
      %p194 = scmp.ne.s32.totalorder %s185, %s186
      %p195 = scmp.eq.s32.totalorder %s28, 0
      %p196 = por %p194, %p195
      %p197 = scmp.ne.s32.totalorder %s185, %s186
      %p198 = scmp.eq.s32.totalorder %s29, 1
      %p199 = por %p197, %p198
      %p201 = scmp.ne.s32.totalorder %s186, %s200
      %p202 = scmp.eq.s32.totalorder %s29, 0
      %p203 = por %p201, %p202
      %s205 = sadd.s32 %s204, 1
      %p208 = scmp.eq.s32.totalorder %s23, 1
      %p209 = scmp.ne.s32.totalorder %s204, %s206
      %p210 = scmp.eq.s32.totalorder %s23, 0
      %p211 = por %p209, %p210
      %p212 = scmp.ne.s32.totalorder %s204, %s206
      %p213 = scmp.eq.s32.totalorder %s28, 1
      %p214 = por %p212, %p213
      %p215 = scmp.ne.s32.totalorder %s206, %s207
      %p216 = scmp.eq.s32.totalorder %s28, 0
      %p217 = por %p215, %p216
      %p218 = scmp.ne.s32.totalorder %s206, %s207
      %p219 = scmp.eq.s32.totalorder %s29, 1
      %p220 = por %p218, %p219
      %p222 = scmp.ne.s32.totalorder %s207, %s221
      %p223 = scmp.eq.s32.totalorder %s29, 0
      %p224 = por %p222, %p223
      %s226 = sadd.s32 %s225, 1
      %p229 = scmp.eq.s32.totalorder %s23, 1
      %p230 = scmp.ne.s32.totalorder %s225, %s227
      %p231 = scmp.eq.s32.totalorder %s23, 0
      %p232 = por %p230, %p231
      %p233 = scmp.ne.s32.totalorder %s225, %s227
      %p234 = scmp.eq.s32.totalorder %s28, 1
      %p235 = por %p233, %p234
      %p236 = scmp.ne.s32.totalorder %s227, %s228
      %p237 = scmp.eq.s32.totalorder %s28, 0
      %p238 = por %p236, %p237
      %p239 = scmp.ne.s32.totalorder %s227, %s228
      %p240 = scmp.eq.s32.totalorder %s29, 1
      %p241 = por %p239, %p240
      %p243 = scmp.ne.s32.totalorder %s228, %s242
      %p244 = scmp.eq.s32.totalorder %s29, 0
      %p245 = por %p243, %p244
      %s247 = sadd.s32 %s246, 1
      %p250 = scmp.eq.s32.totalorder %s23, 1
      %p251 = scmp.ne.s32.totalorder %s246, %s248
      %p252 = scmp.eq.s32.totalorder %s23, 0
      %p253 = por %p251, %p252
      %p254 = scmp.ne.s32.totalorder %s246, %s248
      %p255 = scmp.eq.s32.totalorder %s28, 1
      %p256 = por %p254, %p255
      %p257 = scmp.ne.s32.totalorder %s248, %s249
      %p258 = scmp.eq.s32.totalorder %s28, 0
      %p259 = por %p257, %p258
      %p260 = scmp.ne.s32.totalorder %s248, %s249
      %p261 = scmp.eq.s32.totalorder %s29, 1
      %p262 = por %p260, %p261
      %p264 = scmp.ne.s32.totalorder %s249, %s263
      %p265 = scmp.eq.s32.totalorder %s29, 0
      %p266 = por %p264, %p265
      %s268 = sadd.s32 %s267, 1
      %p271 = scmp.eq.s32.totalorder %s23, 1
      %p272 = scmp.ne.s32.totalorder %s267, %s269
      %p273 = scmp.eq.s32.totalorder %s23, 0
      %p274 = por %p272, %p273
      %p275 = scmp.ne.s32.totalorder %s267, %s269
      %p276 = scmp.eq.s32.totalorder %s28, 1
      %p277 = por %p275, %p276
      %p278 = scmp.ne.s32.totalorder %s269, %s270
      %p279 = scmp.eq.s32.totalorder %s28, 0
      %p280 = por %p278, %p279
      %p281 = scmp.ne.s32.totalorder %s269, %s270
      %p282 = scmp.eq.s32.totalorder %s29, 1
      %p283 = por %p281, %p282
      %p285 = scmp.ne.s32.totalorder %s270, %s284
      %p286 = scmp.eq.s32.totalorder %s29, 0
      %p287 = por %p285, %p286
      %s288 = ssub.s32 %s23, %s30
      %p289 = scmp.eq.s32.totalorder %s288, 0
      %s291 = sadd.s32 %s290, 1
      %s292 = scalar_select %p289, %s290, %s291
      %p295 = pneg %p289
      %p296 = scmp.eq.s32.totalorder %s23, 1
      %p297 = por %p295, %p296
      %p298 = scmp.ne.s32.totalorder %s290, %s293
      %p299 = scmp.eq.s32.totalorder %s23, 0
      %p300 = por %p298, %p299
      %p301 = scmp.ne.s32.totalorder %s290, %s293
      %p302 = scmp.eq.s32.totalorder %s28, 1
      %p303 = por %p301, %p302
      %p304 = scmp.ne.s32.totalorder %s293, %s294
      %p305 = scmp.eq.s32.totalorder %s28, 0
      %p306 = por %p304, %p305
      %p307 = scmp.ne.s32.totalorder %s293, %s294
      %p308 = scmp.eq.s32.totalorder %s29, 1
      %p309 = por %p307, %p308
      %p311 = scmp.ne.s32.totalorder %s294, %s310
      %p312 = scmp.eq.s32.totalorder %s29, 0
      %p313 = por %p311, %p312
      %p314 = scmp.le.s32.totalorder 1, %s23
      %p315 = scmp.lt.s32.totalorder %s23, 3
      %p316 = pnand %p314, %p315
      %p317 = pneg %p316
      // Predicated region
      $region9: #{tpu_custom_call.1} parent=5 // pred_check
        _
      $region10: #{tpu_custom_call.1} parent=5 // pred_check_branch
        %319 = sbr.rel (%p316) target = $region12
      $region11: #{tpu_custom_call.1} parent=5 // pred_region
        %s320 = ssub.s32 %s23, 1
        // Predicated region
        $region13: #{tpu_custom_call.1} parent=11 // pred_check
          %p321 = pneg %p70
        $region14: #{tpu_custom_call.1} parent=11 // pred_check_branch
          %323 = sbr.rel (%p321) target = $region16
        $region15: #{tpu_custom_call.1} parent=11 // pred_region
          %325 = vsyncadd [#allocation5], 0
          %s326 = sshll.u32 %s1, 4
          %s327 = int_to_ptr.hbm [resolvable:$true] %s326
          %s328 = sshll.u32 [#allocation4], 4
          %s329 = int_to_ptr.vmem [resolvable:$true] %s328
          %334 = dma.hbm_to_vmem [thread:$0]  %s327, 192, %s329, [#allocation5], 64, 64, 4
        $region16: #{tpu_custom_call.1} parent=11 // pred_fallthru
          _
        // Predicated region
        $region17: #{tpu_custom_call.1} parent=11 // pred_check
          %p335 = pneg %p91
        $region18: #{tpu_custom_call.1} parent=11 // pred_check_branch
          %337 = sbr.rel (%p335) target = $region20
        $region19: #{tpu_custom_call.1} parent=11 // pred_region
          _
        $region20: #{tpu_custom_call.1} parent=11 // pred_fallthru
          _
        // Predicated region
        $region21: #{tpu_custom_call.1} parent=11 // pred_check
          %p338 = pneg %p112
        $region22: #{tpu_custom_call.1} parent=11 // pred_check_branch
          %340 = sbr.rel (%p338) target = $region24
        $region23: #{tpu_custom_call.1} parent=11 // pred_region
          _
        $region24: #{tpu_custom_call.1} parent=11 // pred_fallthru
          _
        // Predicated region
        $region25: #{tpu_custom_call.1} parent=11 // pred_check
          %p341 = pneg %p133
        $region26: #{tpu_custom_call.1} parent=11 // pred_check_branch
          %343 = sbr.rel (%p341) target = $region28
        $region27: #{tpu_custom_call.1} parent=11 // pred_region
          %345 = vsyncadd [#allocation5], 0
          %s346 = sshll.u32 %s4, 4
          %s347 = int_to_ptr.hbm [resolvable:$true] %s346
          %s348 = sshll.u32 [#allocation6], 4
          %s349 = int_to_ptr.vmem [resolvable:$true] %s348
          %354 = dma.hbm_to_vmem [thread:$0]  %s347, 256, %s349, [#allocation5], 64, 64, 4
        $region28: #{tpu_custom_call.1} parent=11 // pred_fallthru
          _
        // Predicated region
        $region29: #{tpu_custom_call.1} parent=11 // pred_check
          %p355 = pneg %p154
        $region30: #{tpu_custom_call.1} parent=11 // pred_check_branch
          %357 = sbr.rel (%p355) target = $region32
        $region31: #{tpu_custom_call.1} parent=11 // pred_region
          _
        $region32: #{tpu_custom_call.1} parent=11 // pred_fallthru
          _
        // Predicated region
        $region33: #{tpu_custom_call.1} parent=11 // pred_check
          %p358 = pneg %p175
        $region34: #{tpu_custom_call.1} parent=11 // pred_check_branch
          %360 = sbr.rel (%p358) target = $region36
        $region35: #{tpu_custom_call.1} parent=11 // pred_region
          %362 = vsyncadd [#allocation8], 0
          %s363 = sshll.u32 %s6, 4
          %s364 = int_to_ptr.hbm [resolvable:$true] %s363
          %s365 = sshll.u32 [#allocation7], 4
          %s366 = int_to_ptr.vmem [resolvable:$true] %s365
          %371 = dma.hbm_to_vmem [thread:$0]  %s364, 256, %s366, [#allocation8], 64, 64, 4
        $region36: #{tpu_custom_call.1} parent=11 // pred_fallthru
          _
        // Predicated region
        $region37: #{tpu_custom_call.1} parent=11 // pred_check
          %p372 = pneg %p196
        $region38: #{tpu_custom_call.1} parent=11 // pred_check_branch
          %374 = sbr.rel (%p372) target = $region40
        $region39: #{tpu_custom_call.1} parent=11 // pred_region
          _
        $region40: #{tpu_custom_call.1} parent=11 // pred_fallthru
          _
        // Predicated region
        $region41: #{tpu_custom_call.1} parent=11 // pred_check
          %p375 = pneg %p217
        $region42: #{tpu_custom_call.1} parent=11 // pred_check_branch
          %377 = sbr.rel (%p375) target = $region44
        $region43: #{tpu_custom_call.1} parent=11 // pred_region
          %379 = vsyncadd [#allocation8], 0
          %s380 = sshll.u32 %s8, 4
          %s381 = int_to_ptr.hbm [resolvable:$true] %s380
          %s382 = sshll.u32 [#allocation9], 4
          %s383 = int_to_ptr.vmem [resolvable:$true] %s382
          %388 = dma.hbm_to_vmem [thread:$0]  %s381, 256, %s383, [#allocation8], 64, 64, 4
        $region44: #{tpu_custom_call.1} parent=11 // pred_fallthru
          _
        // Predicated region
        $region45: #{tpu_custom_call.1} parent=11 // pred_check
          %p389 = pneg %p238
        $region46: #{tpu_custom_call.1} parent=11 // pred_check_branch
          %391 = sbr.rel (%p389) target = $region48
        $region47: #{tpu_custom_call.1} parent=11 // pred_region
          _
        $region48: #{tpu_custom_call.1} parent=11 // pred_fallthru
          _
        // Predicated region
        $region49: #{tpu_custom_call.1} parent=11 // pred_check
          %p392 = pneg %p259
        $region50: #{tpu_custom_call.1} parent=11 // pred_check_branch
          %394 = sbr.rel (%p392) target = $region52
        $region51: #{tpu_custom_call.1} parent=11 // pred_region
          _
        $region52: #{tpu_custom_call.1} parent=11 // pred_fallthru
          _
        // Predicated region
        $region53: #{tpu_custom_call.1} parent=11 // pred_check
          %p395 = pneg %p280
        $region54: #{tpu_custom_call.1} parent=11 // pred_check_branch
          %397 = sbr.rel (%p395) target = $region56
        $region55: #{tpu_custom_call.1} parent=11 // pred_region
          _
        $region56: #{tpu_custom_call.1} parent=11 // pred_fallthru
          _
      $region12: #{tpu_custom_call.1} parent=5 // pred_fallthru
        _
      %p398 = scmp.lt.s32.totalorder %s23, 2
      // Predicated region
      $region57: #{tpu_custom_call.1} parent=5 // pred_check
        %p399 = pneg %p398
      $region58: #{tpu_custom_call.1} parent=5 // pred_check_branch
        %401 = sbr.rel (%p399) target = $region60
      $region59: #{tpu_custom_call.1} parent=5 // pred_region
        // Predicated region
        $region61: #{tpu_custom_call.1} parent=59 // pred_check
          %p402 = pneg %p43
        $region62: #{tpu_custom_call.1} parent=59 // pred_check_branch
          %404 = sbr.rel (%p402) target = $region64
        $region63: #{tpu_custom_call.1} parent=59 // pred_region
          %s405 = sand.u32 %s33, 1
          %s406 = scalar_lea.sflag [#allocation3], %s405
          %s407 = sand.u32 %s33, 1
          %s408 = smul.addr %s407, 24
          %s409 = scalar_lea.vmem [#allocation2], %s408
          %s410 = smul.u32 3, %s23
          %412 = vsyncadd %s406, 0
          %s413 = smul.addr %s410, 2
          %s414 = smul.addr %s413, 4
          %s415 = scalar_lea.hbm %s0, %s414
          %s416 = sshll.u32 %s415, 4
          %s417 = int_to_ptr.hbm [resolvable:$true] %s416
          %s418 = sshll.u32 %s409, 4
          %s419 = int_to_ptr.vmem [resolvable:$true] %s418
          %424 = dma.hbm_to_vmem [thread:$0]  %s417, 384, %s419, %s406, 64, 64, 4
        $region64: #{tpu_custom_call.1} parent=59 // pred_fallthru
          _
      $region60: #{tpu_custom_call.1} parent=5 // pred_fallthru
        _
      %p425 = scmp.le.s32.totalorder 1, %s23
      %p426 = scmp.lt.s32.totalorder %s23, 3
      %p427 = pnand %p425, %p426
      %p428 = pneg %p427
      // Predicated region
      $region65: #{tpu_custom_call.1} parent=5 // pred_check
        _
      $region66: #{tpu_custom_call.1} parent=5 // pred_check_branch
        %430 = sbr.rel (%p427) target = $region68
      $region67: #{tpu_custom_call.1} parent=5 // pred_region
        %s431 = ssub.s32 %s23, 1
        %s432 = sand.u32 %s36, 1
        %s433 = scalar_lea.sflag [#allocation3], %s432
        %s434 = sand.u32 %s36, 1
        %s435 = smul.addr %s434, 24
        %s436 = scalar_lea.vmem [#allocation2], %s435
        // Predicated region
        $region69: #{tpu_custom_call.1} parent=67 // pred_check
          %p437 = pneg %p49
        $region70: #{tpu_custom_call.1} parent=67 // pred_check_branch
          %439 = sbr.rel (%p437) target = $region72
        $region71: #{tpu_custom_call.1} parent=67 // pred_region
          %441 = dma.done %s433, 384
        $region72: #{tpu_custom_call.1} parent=67 // pred_fallthru
          _
        // Predicated region
        $region73: #{tpu_custom_call.1} parent=67 // pred_check
          %p442 = pneg %p70
        $region74: #{tpu_custom_call.1} parent=67 // pred_check_branch
          %444 = sbr.rel (%p442) target = $region76
        $region75: #{tpu_custom_call.1} parent=67 // pred_region
          %446 = dma.done [#allocation5], 192
        $region76: #{tpu_custom_call.1} parent=67 // pred_fallthru
          _
        // Predicated region
        $region77: #{tpu_custom_call.1} parent=67 // pred_check
          %p447 = pneg %p133
        $region78: #{tpu_custom_call.1} parent=67 // pred_check_branch
          %449 = sbr.rel (%p447) target = $region80
        $region79: #{tpu_custom_call.1} parent=67 // pred_region
          %451 = dma.done [#allocation5], 256
        $region80: #{tpu_custom_call.1} parent=67 // pred_fallthru
          _
        // Predicated region
        $region81: #{tpu_custom_call.1} parent=67 // pred_check
          %p452 = pneg %p175
        $region82: #{tpu_custom_call.1} parent=67 // pred_check_branch
          %454 = sbr.rel (%p452) target = $region84
        $region83: #{tpu_custom_call.1} parent=67 // pred_region
          %456 = dma.done [#allocation8], 256
        $region84: #{tpu_custom_call.1} parent=67 // pred_fallthru
          _
        // Predicated region
        $region85: #{tpu_custom_call.1} parent=67 // pred_check
          %p457 = pneg %p217
        $region86: #{tpu_custom_call.1} parent=67 // pred_check_branch
          %459 = sbr.rel (%p457) target = $region88
        $region87: #{tpu_custom_call.1} parent=67 // pred_region
          %461 = dma.done [#allocation8], 256
        $region88: #{tpu_custom_call.1} parent=67 // pred_fallthru
          _
        %s462 = sand.u32 %s36, 1
        %s463 = scalar_lea.sflag [#allocation3], %s462
        %s464 = sand.u32 %s36, 1
        %s465 = smul.addr %s464, 24
        %s466 = scalar_lea.vmem [#allocation2], %s465
        %p467 = pneg %p49
        %p468 = pneg %p46
        %p469 = pneg %p70
        %p470 = pneg %p67
        %p471 = pneg %p91
        %p472 = pneg %p88
        %p473 = pneg %p112
        %p474 = pneg %p109
        %p475 = pneg %p133
        %p476 = pneg %p130
        %p477 = pneg %p154
        %p478 = pneg %p151
        %p479 = pneg %p175
        %p480 = pneg %p172
        %p481 = pneg %p196
        %p482 = pneg %p193
        %p483 = pneg %p217
        %p484 = pneg %p214
        %p485 = pneg %p238
        %p486 = pneg %p235
        %p487 = pneg %p259
        %p488 = pneg %p256
        %p489 = pneg %p280
        %p490 = pneg %p277
        %p491 = pneg %p306
        %p492 = pneg %p303
        %p493 = scmp.lt.s32.totalorder %s28, 1
        %s494 = scalar_select %p493, %s28, 1
        %s495 = smul.addr %s494, 4
        %s496 = scalar_lea.vmem %s12, %s495
        %s497 = smul.u32 3, %s28
        %p498 = scmp.lt.s32.totalorder %s28, 1
        %s499 = scalar_select %p498, %s28, 1
        %s500 = smul.addr %s499, 4
        %s501 = scalar_lea.vmem %s12, %s500
        %v503 = vld [vmem:[%s436] sm:$0xf]
        %v504 = vld [vmem:[%s436 + $0x4] sm:$0xf]
        %v505 = vld [vmem:[%s436 + $0x8] sm:$0xf]
        %v506 = vld [vmem:[%s436 + $0xc] sm:$0xf]
        %v507 = vld [vmem:[%s436 + $0x10] sm:$0xf]
        %v508 = vld [vmem:[%s436 + $0x14] sm:$0xf]
        %v509 = vld [vmem:[#allocation4] sm:$0xf]
        %v510 = vld [vmem:[#allocation4 + $0x4] sm:$0xf]
        %v511 = vld [vmem:[#allocation4 + $0x8] sm:$0x1]
        %v512 = vunpack.c.l.bf16 %v503
        %v513 = vunpack.c.l.bf16 %v504
        %v514 = vunpack.c.l.bf16 %v505
        %v515 = vunpack.c.l.bf16 %v506
        %v516 = vunpack.c.l.bf16 %v507
        %v517 = vunpack.c.l.bf16 %v508
        %vm518 = vcmask 261120
        %v519 = vsel %vm518, %v512, 0.0
        %v520 = vsel %vm518, %v513, 0.0
        %v521 = vadd.f32 %v519, %v520
        %v522 = vrot.slane %v521, 4
        %v523 = vadd.f32 %v521, %v522
        %v524 = vrot.slane %v523, 2
        %v525 = vadd.f32 %v523, %v524
        %v526 = vrot.slane %v525, 1
        %v527 = vadd.f32 %v525, %v526
        %v528 = vsel %vm518, %v514, 0.0
        %v529 = vsel %vm518, %v515, 0.0
        %v530 = vadd.f32 %v528, %v529
        %v531 = vrot.slane %v530, 4
        %v532 = vadd.f32 %v530, %v531
        %v533 = vrot.slane %v532, 2
        %v534 = vadd.f32 %v532, %v533
        %v535 = vrot.slane %v534, 1
        %v536 = vadd.f32 %v534, %v535
        %v537 = vsel %vm518, %v516, 0.0
        %v538 = vsel %vm518, %v517, 0.0
        %v539 = vadd.f32 %v537, %v538
        %v540 = vrot.slane %v539, 4
        %v541 = vadd.f32 %v539, %v540
        %v542 = vrot.slane %v541, 2
        %v543 = vadd.f32 %v541, %v542
        %v544 = vrot.slane %v543, 1
        %v545 = vadd.f32 %v543, %v544
        %v546 = vrcp.pop 16.0
        %v547 = vmul.f32 16.0, %v546
        %v548 = vsub.f32 1.0, %v547
        %v549 = vmul.f32 %v546, %v548
        %v550 = vadd.f32 %v546, %v549
        %vm551 = vweird.f32 %v546
        %v552 = vsel %vm551, %v546, %v550
        %v553 = vmul.f32 %v527, %v552
        %v554 = vmul.f32 %v536, %v552
        %v555 = vmul.f32 %v545, %v552
        %v556 = vpack.c.bf16 %v553, %v553
        %v557 = vpack.c.bf16 %v554, %v554
        %v558 = vpack.c.bf16 %v555, %v555
        %v565 = vunpack.c.l.b16 %v503
        %v566 = vunpack.c.l.b16 %v504
        %v567 = vunpack.c.l.b16 %v505
        %v568 = vunpack.c.l.b16 %v506
        %v569 = vunpack.c.l.b16 %v507
        %v570 = vunpack.c.l.b16 %v508
        %v571 = vpack.c.b16 %v566, %v565
        %v572 = vpack.c.b16 %v568, %v567
        %v573 = vpack.c.b16 %v570, %v569
        %v575 = vshrl.u32 %v571, 16
        %v577 = vrot.slane %v575, 7
        %v578 = vshll.u32 %v571, 16
        %v580 = vor.u32 %v577, %v578
        %v582 = vshrl.u32 %v572, 16
        %v584 = vrot.slane %v582, 7
        %v585 = vshll.u32 %v572, 16
        %v587 = vor.u32 %v584, %v585
        %v589 = vshrl.u32 %v573, 16
        %v591 = vrot.slane %v589, 7
        %v592 = vshll.u32 %v573, 16
        %v594 = vor.u32 %v591, %v592
        %vm601 = vcmask 1040384
        %vm602 = vsmask.f32 256
        %vm603 = vmand %vm601, %vm602
        %v604 = vsel %vm603, %v556, %v580
        %v605 = vsel %vm603, %v557, %v587
        %v606 = vsel %vm603, %v558, %v594
        %v607 = vunpack.c.l.bf16 %v604
        %v608 = vunpack.c.h.bf16 %v604
        %v609 = vunpack.c.l.bf16 %v577
        %v610 = vunpack.c.l.bf16 %v605
        %v611 = vunpack.c.h.bf16 %v605
        %v612 = vunpack.c.l.bf16 %v584
        %v613 = vunpack.c.l.bf16 %v606
        %v614 = vunpack.c.h.bf16 %v606
        %v615 = vunpack.c.l.bf16 %v591
        %v616 = vunpack.c.l.bf16 %v509
        %v617 = vunpack.c.l.bf16 %v510
        %v618 = vunpack.c.l.bf16 %v511
        %v619 = vadd.f32 %v607, %v616
        %v620 = vadd.f32 %v608, %v617
        %v621 = vadd.f32 %v609, %v618
        %v622 = vadd.f32 %v610, %v616
        %v623 = vadd.f32 %v611, %v617
        %v624 = vadd.f32 %v612, %v618
        %v625 = vadd.f32 %v613, %v616
        %v626 = vadd.f32 %v614, %v617
        %v627 = vadd.f32 %v615, %v618
        %v628 = vpack.c.bf16 %v619, %v619
        %v629 = vpack.c.bf16 %v620, %v620
        %v630 = vpack.c.bf16 %v621, %v621
        %v631 = vpack.c.bf16 %v622, %v622
        %v632 = vpack.c.bf16 %v623, %v623
        %v633 = vpack.c.bf16 %v624, %v624
        %v634 = vpack.c.bf16 %v625, %v625
        %v635 = vpack.c.bf16 %v626, %v626
        %v636 = vpack.c.bf16 %v627, %v627
        %v646 = vunpack.c.l.b16 %v628
        %v647 = vunpack.c.l.b16 %v629
        %v648 = vunpack.c.l.b16 %v630
        %v649 = vunpack.c.l.b16 %v631
        %v650 = vunpack.c.l.b16 %v632
        %v651 = vunpack.c.l.b16 %v633
        %v652 = vunpack.c.l.b16 %v634
        %v653 = vunpack.c.l.b16 %v635
        %v654 = vunpack.c.l.b16 %v636
        %v655 = vpack.c.b16 %v648, %v648
        %v656 = vpack.c.b16 %v651, %v651
        %v657 = vpack.c.b16 %v654, %v654
        %v661 = vsel %vm603, %v655, 0
        %v662 = vsel %vm603, %v656, 0
        %v663 = vsel %vm603, %v657, 0
        %v667 = vunpack.c.l.b16 %v661
        %v668 = vunpack.c.l.b16 %v662
        %v669 = vunpack.c.l.b16 %v663
        %v671 = vpack.i.b16 %v509, %v509
        %v673 = vperm.slane %v671, 0
        %v674 = vunpack.c.l.bf16 %v556
        %v675 = vunpack.c.l.bf16 %v557
        %v676 = vunpack.c.l.bf16 %v558
        %v677 = vunpack.c.l.bf16 %v673
        %v678 = vadd.f32 %v674, %v677
        %v679 = vadd.f32 %v675, %v677
        %v680 = vadd.f32 %v676, %v677
        %v681 = vpack.c.bf16 %v678, %v678
        %v682 = vpack.c.bf16 %v679, %v679
        %v683 = vpack.c.bf16 %v680, %v680
        %v684 = vld [vmem:[%s2] sm:$0xf]
        %v685 = vld [vmem:[%s2 + $0x4] sm:$0xf]
        %v686 = vld [vmem:[%s2 + $0x8] sm:$0xf]
        %v687 = vld [vmem:[%s2 + $0xc] sm:$0xf]
        %v688 = vld [vmem:[%s3] sm:$0x1]
        %v690 = vperm.slane %v688, 0
        %v695 = vunpack.c.l.b16 %v681
        %v696 = vunpack.c.l.b16 %v682
        %v697 = vunpack.c.l.b16 %v683
        %v698 = vrot.slane %v696, 7
        %vm699 = vcmask 1041409
        %v700 = vsel %vm699, %v698, %v695
        %v701 = vrot.slane %v697, 6
        %vm702 = vcmask 1042434
        %v703 = vsel %vm702, %v701, %v700
        %v704 = vpack.c.b16 %v703, %v703
        %v709 = vunpack.c.l.b16 %v684
        %v710 = vunpack.c.l.b16 %v685
        %v711 = vunpack.c.l.b16 %v686
        %v712 = vunpack.c.l.b16 %v687
        %v713 = vpack.c.b16 %v710, %v709
        %v714 = vpack.c.b16 %v712, %v711
        %v718 = vsel %vm518, %v704, 0
        %720 = vmatpush.bf16.msra.mxu0 0
        %721 = vmatpush.bf16.msra.mxu0 0
        %722 = vmatpush.bf16.msra.mxu0 0
        %723 = vmatpush.bf16.msra.mxu0 0
        %724 = vmatpush.bf16.msra.mxu0 0
        %725 = vmatpush.bf16.msra.mxu0 0
        %726 = vmatpush.bf16.msra.mxu0 %v714
        %727 = vmatpush.bf16.msra.mxu0 %v713
        %728 = vmatmul.bf16.gmra.mxu0 %v718
        %v729 = vpop.f32.mrf.mxu0
        %v730 = vadd.f32 %v690, %v729
        %v731 = vpop.f32.mrf.mxu0
        %732 = vdwg.mxu0
        %v733 = vpack.c.bf16 %v730, %v730
        %v734 = vld [vmem:[#allocation6] sm:$0xf]
        %v735 = vld [vmem:[#allocation6 + $0x4] sm:$0xf]
        %v736 = vld [vmem:[#allocation6 + $0x8] sm:$0xf]
        %v737 = vld [vmem:[#allocation6 + $0xc] sm:$0xf]
        %v738 = vld [vmem:[%s5] sm:$0x1]
        %v740 = vperm.slane %v738, 0
        %v742 = vpack.c.b16 %v647, %v646
        %v743 = vpack.c.b16 %v649, %v667
        %v744 = vpack.c.b16 %v668, %v650
        %v745 = vpack.c.b16 %v653, %v652
        %v746 = vpack.c.b16 %v669, %v669
        %v751 = vunpack.c.l.b16 %v734
        %v752 = vunpack.c.l.b16 %v735
        %v753 = vunpack.c.l.b16 %v736
        %v754 = vunpack.c.l.b16 %v737
        %v755 = vpack.c.b16 %v752, %v751
        %v756 = vpack.c.b16 %v754, %v753
        %v760 = vsel %vm518, %v742, 0
        %v763 = vsel %vm518, %v743, 0
        %v766 = vsel %vm518, %v744, 0
        %v769 = vsel %vm518, %v745, 0
        %v772 = vsel %vm518, %v746, 0
        %774 = vmatpush.bf16.msra.mxu0 0
        %775 = vmatpush.bf16.msra.mxu0 0
        %776 = vmatpush.bf16.msra.mxu0 0
        %777 = vmatpush.bf16.msra.mxu0 0
        %778 = vmatpush.bf16.msra.mxu0 0
        %779 = vmatpush.bf16.msra.mxu0 0
        %780 = vmatpush.bf16.msra.mxu0 %v756
        %781 = vmatpush.bf16.msra.mxu0 %v755
        %782 = vmatmul.bf16.gmra.mxu0 %v760
        %v783 = vpop.f32.mrf.mxu0
        %v784 = vadd.f32 %v740, %v783
        %v785 = vpop.f32.mrf.mxu0
        %v786 = vadd.f32 %v740, %v785
        %787 = vmatmul.bf16.gmra.mxu0 %v763
        %v788 = vpop.f32.mrf.mxu0
        %v789 = vadd.f32 %v740, %v788
        %v790 = vpop.f32.mrf.mxu0
        %v791 = vadd.f32 %v740, %v790
        %792 = vmatmul.bf16.gmra.mxu0 %v766
        %v793 = vpop.f32.mrf.mxu0
        %v794 = vadd.f32 %v740, %v793
        %v795 = vpop.f32.mrf.mxu0
        %v796 = vadd.f32 %v740, %v795
        %797 = vmatmul.bf16.gmra.mxu0 %v769
        %v798 = vpop.f32.mrf.mxu0
        %v799 = vadd.f32 %v740, %v798
        %v800 = vpop.f32.mrf.mxu0
        %v801 = vadd.f32 %v740, %v800
        %802 = vmatmul.bf16.gmra.mxu0 %v772
        %v803 = vpop.f32.mrf.mxu0
        %v804 = vadd.f32 %v740, %v803
        %v805 = vpop.f32.mrf.mxu0
        %806 = vdwg.mxu0
        %v807 = vpack.c.bf16 %v784, %v784
        %v808 = vpack.c.bf16 %v786, %v786
        %v809 = vpack.c.bf16 %v789, %v789
        %v810 = vpack.c.bf16 %v791, %v791
        %v811 = vpack.c.bf16 %v794, %v794
        %v812 = vpack.c.bf16 %v796, %v796
        %v813 = vpack.c.bf16 %v799, %v799
        %v814 = vpack.c.bf16 %v801, %v801
        %v815 = vpack.c.bf16 %v804, %v804
        %v816 = vld [vmem:[#allocation7] sm:$0xf]
        %v817 = vld [vmem:[#allocation7 + $0x4] sm:$0xf]
        %v818 = vld [vmem:[#allocation7 + $0x8] sm:$0xf]
        %v819 = vld [vmem:[#allocation7 + $0xc] sm:$0xf]
        %v820 = vld [vmem:[%s7] sm:$0x1]
        %v822 = vperm.slane %v820, 0
        %v828 = vunpack.c.l.b16 %v816
        %v829 = vunpack.c.l.b16 %v817
        %v830 = vunpack.c.l.b16 %v818
        %v831 = vunpack.c.l.b16 %v819
        %v832 = vpack.c.b16 %v829, %v828
        %v833 = vpack.c.b16 %v831, %v830
        %836 = vmatpush.bf16.msra.mxu0 0
        %837 = vmatpush.bf16.msra.mxu0 0
        %838 = vmatpush.bf16.msra.mxu0 0
        %839 = vmatpush.bf16.msra.mxu0 0
        %840 = vmatpush.bf16.msra.mxu0 0
        %841 = vmatpush.bf16.msra.mxu0 0
        %842 = vmatpush.bf16.msra.mxu0 %v833
        %843 = vmatpush.bf16.msra.mxu0 %v832
        %844 = vmatmul.bf16.gmra.mxu0 %v760
        %v845 = vpop.f32.mrf.mxu0
        %v846 = vadd.f32 %v822, %v845
        %v847 = vpop.f32.mrf.mxu0
        %v848 = vadd.f32 %v822, %v847
        %849 = vmatmul.bf16.gmra.mxu0 %v763
        %v850 = vpop.f32.mrf.mxu0
        %v851 = vadd.f32 %v822, %v850
        %v852 = vpop.f32.mrf.mxu0
        %v853 = vadd.f32 %v822, %v852
        %854 = vmatmul.bf16.gmra.mxu0 %v766
        %v855 = vpop.f32.mrf.mxu0
        %v856 = vadd.f32 %v822, %v855
        %v857 = vpop.f32.mrf.mxu0
        %v858 = vadd.f32 %v822, %v857
        %859 = vmatmul.bf16.gmra.mxu0 %v769
        %v860 = vpop.f32.mrf.mxu0
        %v861 = vadd.f32 %v822, %v860
        %v862 = vpop.f32.mrf.mxu0
        %v863 = vadd.f32 %v822, %v862
        %864 = vmatmul.bf16.gmra.mxu0 %v772
        %v865 = vpop.f32.mrf.mxu0
        %v866 = vadd.f32 %v822, %v865
        %v867 = vpop.f32.mrf.mxu0
        %868 = vdwg.mxu0
        %v869 = vpack.c.bf16 %v846, %v846
        %v870 = vpack.c.bf16 %v848, %v848
        %v871 = vpack.c.bf16 %v851, %v851
        %v872 = vpack.c.bf16 %v853, %v853
        %v873 = vpack.c.bf16 %v856, %v856
        %v874 = vpack.c.bf16 %v858, %v858
        %v875 = vpack.c.bf16 %v861, %v861
        %v876 = vpack.c.bf16 %v863, %v863
        %v877 = vpack.c.bf16 %v866, %v866
        %v879 = vrot.slane %v733, 3
        %vm880 = vcmask 1040384
        %v883 = vsel %vm880, %v733, %v879
        %v885 = vsel %vm699, %v733, %v879
        %v887 = vrot.slane %v885, 1
        %v888 = vunpack.i.l.s16 %v883
        %v889 = vunpack.i.h.s16 %v883
        %v890 = vunpack.i.l.s16 %v887
        %v891 = vpack.i.b16 %v888, %v888
        %v892 = vpack.i.b16 %v889, %v889
        %v893 = vpack.i.b16 %v890, %v890
        %v894 = vperm.slane %v891, 0
        %v895 = vperm.slane %v892, 0
        %v896 = vperm.slane %v893, 0
        %v898 = vpack.i.b16 %v894, %v894
        %v900 = vperm.slane %v898, 0
        %v902 = vpack.i.b16 %v895, %v895
        %v904 = vperm.slane %v902, 0
        %v906 = vpack.i.b16 %v896, %v896
        %v908 = vperm.slane %v906, 0
        %v909 = vunpack.c.l.bf16 %v807
        %v910 = vunpack.c.l.bf16 %v808
        %v911 = vunpack.c.l.bf16 %v809
        %v912 = vunpack.c.l.bf16 %v810
        %v913 = vunpack.c.l.bf16 %v811
        %v914 = vunpack.c.l.bf16 %v812
        %v915 = vunpack.c.l.bf16 %v813
        %v916 = vunpack.c.l.bf16 %v814
        %v917 = vunpack.c.l.bf16 %v815
        %v918 = vunpack.c.l.bf16 %v900
        %v919 = vunpack.c.l.bf16 %v904
        %v920 = vunpack.c.l.bf16 %v908
        %v921 = vmul.f32 %v909, %v918
        %v922 = vmul.f32 %v910, %v918
        %v923 = vmul.f32 %v911, %v918
        %v924 = vmul.f32 %v912, %v919
        %v925 = vmul.f32 %v913, %v919
        %v926 = vmul.f32 %v914, %v919
        %v927 = vmul.f32 %v915, %v920
        %v928 = vmul.f32 %v916, %v920
        %v929 = vmul.f32 %v917, %v920
        %v930 = vpack.c.bf16 %v921, %v921
        %v931 = vpack.c.bf16 %v922, %v922
        %v932 = vpack.c.bf16 %v923, %v923
        %v933 = vpack.c.bf16 %v924, %v924
        %v934 = vpack.c.bf16 %v925, %v925
        %v935 = vpack.c.bf16 %v926, %v926
        %v936 = vpack.c.bf16 %v927, %v927
        %v937 = vpack.c.bf16 %v928, %v928
        %v938 = vpack.c.bf16 %v929, %v929
        %v939 = vld [vmem:[%s10] sm:$0xf]
        %v940 = vld [vmem:[%s10 + $0x4] sm:$0xf]
        %v941 = vld [vmem:[%s10 + $0x8] sm:$0xf]
        %v942 = vld [vmem:[%s10 + $0xc] sm:$0xf]
        %v952 = vunpack.c.l.b16 %v930
        %v953 = vunpack.c.l.b16 %v931
        %v954 = vunpack.c.l.b16 %v932
        %v955 = vunpack.c.l.b16 %v933
        %v956 = vunpack.c.l.b16 %v934
        %v957 = vunpack.c.l.b16 %v935
        %v958 = vunpack.c.l.b16 %v936
        %v959 = vunpack.c.l.b16 %v937
        %v960 = vunpack.c.l.b16 %v938
        %v961 = vpack.c.b16 %v953, %v952
        %v962 = vpack.c.b16 %v955, %v954
        %v963 = vpack.c.b16 %v957, %v956
        %v964 = vpack.c.b16 %v959, %v958
        %v965 = vpack.c.b16 %v960, %v960
        %v970 = vunpack.c.l.b16 %v939
        %v971 = vunpack.c.l.b16 %v940
        %v972 = vunpack.c.l.b16 %v941
        %v973 = vunpack.c.l.b16 %v942
        %v974 = vpack.c.b16 %v971, %v970
        %v975 = vpack.c.b16 %v973, %v972
        %v979 = vsel %vm518, %v961, 0
        %v982 = vsel %vm518, %v962, 0
        %v985 = vsel %vm518, %v963, 0
        %v988 = vsel %vm518, %v964, 0
        %v991 = vsel %vm518, %v965, 0
        %993 = vmatpush.bf16.msra.mxu0 0
        %994 = vmatpush.bf16.msra.mxu0 0
        %995 = vmatpush.bf16.msra.mxu0 0
        %996 = vmatpush.bf16.msra.mxu0 0
        %997 = vmatpush.bf16.msra.mxu0 0
        %998 = vmatpush.bf16.msra.mxu0 0
        %999 = vmatpush.bf16.msra.mxu0 %v975
        %1000 = vmatpush.bf16.msra.mxu0 %v974
        %1001 = vmatmul.bf16.gmra.mxu0 %v979
        %v1002 = vpop.f32.mrf.mxu0
        %v1003 = vadd.f32 0.0, %v1002
        %v1004 = vpop.f32.mrf.mxu0
        %v1005 = vadd.f32 0.0, %v1004
        %1006 = vmatmul.bf16.gmra.mxu0 %v982
        %v1007 = vpop.f32.mrf.mxu0
        %v1008 = vadd.f32 0.0, %v1007
        %v1009 = vpop.f32.mrf.mxu0
        %v1010 = vadd.f32 0.0, %v1009
        %1011 = vmatmul.bf16.gmra.mxu0 %v985
        %v1012 = vpop.f32.mrf.mxu0
        %v1013 = vadd.f32 0.0, %v1012
        %v1014 = vpop.f32.mrf.mxu0
        %v1015 = vadd.f32 0.0, %v1014
        %1016 = vmatmul.bf16.gmra.mxu0 %v988
        %v1017 = vpop.f32.mrf.mxu0
        %v1018 = vadd.f32 0.0, %v1017
        %v1019 = vpop.f32.mrf.mxu0
        %v1020 = vadd.f32 0.0, %v1019
        %1021 = vmatmul.bf16.gmra.mxu0 %v991
        %v1022 = vpop.f32.mrf.mxu0
        %v1023 = vadd.f32 0.0, %v1022
        %v1024 = vpop.f32.mrf.mxu0
        %1025 = vdwg.mxu0
        %v1026 = vlaneseq
        %v1027 = vshrl.u32 %v1026, 7
        %v1028 = vadd.s32 %v1027, 8
        %v1029 = vadd.s32 %v1027, 16
        %vm1030 = vcmp.lt.s32.totalorder %v1027, 17
        %vm1031 = vcmp.lt.s32.totalorder %v1028, 17
        %vm1032 = vcmp.lt.s32.totalorder %v1029, 17
        %v1033 = vsel %vm1030, 1, 0
        %v1034 = vsel %vm1031, 1, 0
        %v1035 = vsel %vm1032, 1, 0
        %vm1036 = vcmp.eq.s32.totalorder %v1033, 1
        %vm1037 = vcmp.eq.s32.totalorder %v1034, 1
        %vm1038 = vcmp.eq.s32.totalorder %v1035, 1
        %v1039 = vsel %vm1036, %v1003, -1e+30
        %v1040 = vsel %vm1037, %v1005, -1e+30
        %v1041 = vsel %vm1038, %v1008, -1e+30
        %v1042 = vsel %vm1036, %v1010, -1e+30
        %v1043 = vsel %vm1037, %v1013, -1e+30
        %v1044 = vsel %vm1038, %v1015, -1e+30
        %v1045 = vsel %vm1036, %v1018, -1e+30
        %v1046 = vsel %vm1037, %v1020, -1e+30
        %v1047 = vsel %vm1038, %v1023, -1e+30
        %vm1048 = vcmask 31744
        %v1049 = vsel %vm1048, %v1039, -inf
        %v1050 = vsel %vm1048, %v1040, -inf
        %v1051 = vsel %vm1048, %v1041, -inf
        %v1052 = vmax.f32 %v1049, %v1051
        %v1053 = vmax.f32 %v1052, %v1050
        %v1054 = vrot.slane %v1053, 4
        %v1055 = vmax.f32 %v1053, %v1054
        %v1056 = vrot.slane %v1055, 2
        %v1057 = vmax.f32 %v1055, %v1056
        %v1058 = vrot.slane %v1057, 1
        %v1059 = vmax.f32 %v1057, %v1058
        %v1060 = vsel %vm1048, %v1042, -inf
        %v1061 = vsel %vm1048, %v1043, -inf
        %v1062 = vsel %vm1048, %v1044, -inf
        %v1063 = vmax.f32 %v1060, %v1062
        %v1064 = vmax.f32 %v1063, %v1061
        %v1065 = vrot.slane %v1064, 4
        %v1066 = vmax.f32 %v1064, %v1065
        %v1067 = vrot.slane %v1066, 2
        %v1068 = vmax.f32 %v1066, %v1067
        %v1069 = vrot.slane %v1068, 1
        %v1070 = vmax.f32 %v1068, %v1069
        %v1071 = vsel %vm1048, %v1045, -inf
        %v1072 = vsel %vm1048, %v1046, -inf
        %v1073 = vsel %vm1048, %v1047, -inf
        %v1074 = vmax.f32 %v1071, %v1073
        %v1075 = vmax.f32 %v1074, %v1072
        %v1076 = vrot.slane %v1075, 4
        %v1077 = vmax.f32 %v1075, %v1076
        %v1078 = vrot.slane %v1077, 2
        %v1079 = vmax.f32 %v1077, %v1078
        %v1080 = vrot.slane %v1079, 1
        %v1081 = vmax.f32 %v1079, %v1080
        %v1082 = vsub.f32 %v1039, %v1059
        %v1083 = vsub.f32 %v1040, %v1059
        %v1084 = vsub.f32 %v1041, %v1059
        %v1085 = vsub.f32 %v1042, %v1070
        %v1086 = vsub.f32 %v1043, %v1070
        %v1087 = vsub.f32 %v1044, %v1070
        %v1088 = vsub.f32 %v1045, %v1081
        %v1089 = vsub.f32 %v1046, %v1081
        %v1090 = vsub.f32 %v1047, %v1081
        %v1091 = vmul.f32 %v1082, 1.442695
        %v1092 = vpow.pop %v1091
        %v1093 = vmul.f32 %v1083, 1.442695
        %v1094 = vpow.pop %v1093
        %v1095 = vmul.f32 %v1084, 1.442695
        %v1096 = vpow.pop %v1095
        %v1097 = vmul.f32 %v1085, 1.442695
        %v1098 = vpow.pop %v1097
        %v1099 = vmul.f32 %v1086, 1.442695
        %v1100 = vpow.pop %v1099
        %v1101 = vmul.f32 %v1087, 1.442695
        %v1102 = vpow.pop %v1101
        %v1103 = vmul.f32 %v1088, 1.442695
        %v1104 = vpow.pop %v1103
        %v1105 = vmul.f32 %v1089, 1.442695
        %v1106 = vpow.pop %v1105
        %v1107 = vmul.f32 %v1090, 1.442695
        %v1108 = vpow.pop %v1107
        %v1109 = vsel %vm1048, %v1092, 0.0
        %v1110 = vsel %vm1048, %v1094, 0.0
        %v1111 = vadd.f32 %v1109, %v1110
        %v1112 = vsel %vm1048, %v1096, 0.0
        %v1113 = vadd.f32 %v1111, %v1112
        %v1114 = vrot.slane %v1113, 4
        %v1115 = vadd.f32 %v1113, %v1114
        %v1116 = vrot.slane %v1115, 2
        %v1117 = vadd.f32 %v1115, %v1116
        %v1118 = vrot.slane %v1117, 1
        %v1119 = vadd.f32 %v1117, %v1118
        %v1120 = vsel %vm1048, %v1098, 0.0
        %v1121 = vsel %vm1048, %v1100, 0.0
        %v1122 = vadd.f32 %v1120, %v1121
        %v1123 = vsel %vm1048, %v1102, 0.0
        %v1124 = vadd.f32 %v1122, %v1123
        %v1125 = vrot.slane %v1124, 4
        %v1126 = vadd.f32 %v1124, %v1125
        %v1127 = vrot.slane %v1126, 2
        %v1128 = vadd.f32 %v1126, %v1127
        %v1129 = vrot.slane %v1128, 1
        %v1130 = vadd.f32 %v1128, %v1129
        %v1131 = vsel %vm1048, %v1104, 0.0
        %v1132 = vsel %vm1048, %v1106, 0.0
        %v1133 = vadd.f32 %v1131, %v1132
        %v1134 = vsel %vm1048, %v1108, 0.0
        %v1135 = vadd.f32 %v1133, %v1134
        %v1136 = vrot.slane %v1135, 4
        %v1137 = vadd.f32 %v1135, %v1136
        %v1138 = vrot.slane %v1137, 2
        %v1139 = vadd.f32 %v1137, %v1138
        %v1140 = vrot.slane %v1139, 1
        %v1141 = vadd.f32 %v1139, %v1140
        %v1142 = vrcp.pop %v1119
        %v1143 = vrcp.pop %v1130
        %v1144 = vrcp.pop %v1141
        %v1145 = vmul.f32 %v1092, %v1142
        %v1146 = vmul.f32 %v1094, %v1142
        %v1147 = vmul.f32 %v1096, %v1142
        %v1148 = vmul.f32 %v1098, %v1143
        %v1149 = vmul.f32 %v1100, %v1143
        %v1150 = vmul.f32 %v1102, %v1143
        %v1151 = vmul.f32 %v1104, %v1144
        %v1152 = vmul.f32 %v1106, %v1144
        %v1153 = vmul.f32 %v1108, %v1144
        %v1154 = vpack.c.bf16 %v1145, %v1145
        %v1155 = vpack.c.bf16 %v1146, %v1146
        %v1156 = vpack.c.bf16 %v1147, %v1147
        %v1157 = vpack.c.bf16 %v1148, %v1148
        %v1158 = vpack.c.bf16 %v1149, %v1149
        %v1159 = vpack.c.bf16 %v1150, %v1150
        %v1160 = vpack.c.bf16 %v1151, %v1151
        %v1161 = vpack.c.bf16 %v1152, %v1152
        %v1162 = vpack.c.bf16 %v1153, %v1153
        %v1163 = vld [vmem:[%s11] sm:$0x3]
        %v1173 = vunpack.c.l.b16 %v1154
        %v1174 = vunpack.c.l.b16 %v1155
        %v1175 = vunpack.c.l.b16 %v1156
        %v1176 = vunpack.c.l.b16 %v1157
        %v1177 = vunpack.c.l.b16 %v1158
        %v1178 = vunpack.c.l.b16 %v1159
        %v1179 = vunpack.c.l.b16 %v1160
        %v1180 = vunpack.c.l.b16 %v1161
        %v1181 = vunpack.c.l.b16 %v1162
        %v1182 = vpack.c.b16 %v1174, %v1173
        %v1183 = vpack.c.b16 %v1176, %v1175
        %v1184 = vpack.c.b16 %v1178, %v1177
        %v1185 = vpack.c.b16 %v1180, %v1179
        %v1186 = vpack.c.b16 %v1181, %v1181
        %v1188 = vsel %vm1048, %v1182, 0
        %v1191 = vsel %vm1048, %v1183, 0
        %v1194 = vsel %vm1048, %v1184, 0
        %v1197 = vsel %vm1048, %v1185, 0
        %v1200 = vsel %vm1048, %v1186, 0
        %vm1202 = vcmask 1041408
        %v1204 = vsel %vm1202, %v1163, 0
        %1206 = vmatpush.bf16.msra.mxu0 0
        %1207 = vmatpush.bf16.msra.mxu0 0
        %1208 = vmatpush.bf16.msra.mxu0 0
        %1209 = vmatpush.bf16.msra.mxu0 0
        %1210 = vmatpush.bf16.msra.mxu0 0
        %1211 = vmatpush.bf16.msra.mxu0 0
        %1212 = vmatpush.bf16.msra.mxu0 0
        %1213 = vmatpush.bf16.msra.mxu0 %v1204
        %1214 = vmatmul.bf16.gmra.mxu0 %v1188
        %v1215 = vpop.f32.mrf.mxu0
        %v1216 = vadd.f32 0.0, %v1215
        %v1217 = vpop.f32.mrf.mxu0
        %v1218 = vadd.f32 0.0, %v1217
        %1219 = vmatmul.bf16.gmra.mxu0 %v1191
        %v1220 = vpop.f32.mrf.mxu0
        %v1221 = vadd.f32 0.0, %v1220
        %v1222 = vpop.f32.mrf.mxu0
        %v1223 = vadd.f32 0.0, %v1222
        %1224 = vmatmul.bf16.gmra.mxu0 %v1194
        %v1225 = vpop.f32.mrf.mxu0
        %v1226 = vadd.f32 0.0, %v1225
        %v1227 = vpop.f32.mrf.mxu0
        %v1228 = vadd.f32 0.0, %v1227
        %1229 = vmatmul.bf16.gmra.mxu0 %v1197
        %v1230 = vpop.f32.mrf.mxu0
        %v1231 = vadd.f32 0.0, %v1230
        %v1232 = vpop.f32.mrf.mxu0
        %v1233 = vadd.f32 0.0, %v1232
        %1234 = vmatmul.bf16.gmra.mxu0 %v1200
        %v1235 = vpop.f32.mrf.mxu0
        %v1236 = vadd.f32 0.0, %v1235
        %v1237 = vpop.f32.mrf.mxu0
        %1238 = vdwg.mxu0
        %v1239 = vunpack.c.l.bf16 %v869
        %v1240 = vunpack.c.l.bf16 %v870
        %v1241 = vunpack.c.l.bf16 %v871
        %v1242 = vunpack.c.l.bf16 %v872
        %v1243 = vunpack.c.l.bf16 %v873
        %v1244 = vunpack.c.l.bf16 %v874
        %v1245 = vunpack.c.l.bf16 %v875
        %v1246 = vunpack.c.l.bf16 %v876
        %v1247 = vunpack.c.l.bf16 %v877
        %v1248 = vmul.f32 %v1216, %v1239
        %v1249 = vmul.f32 %v1218, %v1240
        %v1250 = vmul.f32 %v1221, %v1241
        %v1251 = vmul.f32 %v1223, %v1242
        %v1252 = vmul.f32 %v1226, %v1243
        %v1253 = vmul.f32 %v1228, %v1244
        %v1254 = vmul.f32 %v1231, %v1245
        %v1255 = vmul.f32 %v1233, %v1246
        %v1256 = vmul.f32 %v1236, %v1247
        %v1257 = vsel %vm518, %v1248, 0.0
        %v1258 = vsel %vm518, %v1249, 0.0
        %v1259 = vadd.f32 %v1257, %v1258
        %v1260 = vsel %vm518, %v1250, 0.0
        %v1261 = vadd.f32 %v1259, %v1260
        %v1262 = vrot.slane %v1261, 4
        %v1263 = vadd.f32 %v1261, %v1262
        %v1264 = vrot.slane %v1263, 2
        %v1265 = vadd.f32 %v1263, %v1264
        %v1266 = vrot.slane %v1265, 1
        %v1267 = vadd.f32 %v1265, %v1266
        %v1268 = vsel %vm518, %v1251, 0.0
        %v1269 = vsel %vm518, %v1252, 0.0
        %v1270 = vadd.f32 %v1268, %v1269
        %v1271 = vsel %vm518, %v1253, 0.0
        %v1272 = vadd.f32 %v1270, %v1271
        %v1273 = vrot.slane %v1272, 4
        %v1274 = vadd.f32 %v1272, %v1273
        %v1275 = vrot.slane %v1274, 2
        %v1276 = vadd.f32 %v1274, %v1275
        %v1277 = vrot.slane %v1276, 1
        %v1278 = vadd.f32 %v1276, %v1277
        %v1279 = vsel %vm518, %v1254, 0.0
        %v1280 = vsel %vm518, %v1255, 0.0
        %v1281 = vadd.f32 %v1279, %v1280
        %v1282 = vsel %vm518, %v1256, 0.0
        %v1283 = vadd.f32 %v1281, %v1282
        %v1284 = vrot.slane %v1283, 4
        %v1285 = vadd.f32 %v1283, %v1284
        %v1286 = vrot.slane %v1285, 2
        %v1287 = vadd.f32 %v1285, %v1286
        %v1288 = vrot.slane %v1287, 1
        %v1289 = vadd.f32 %v1287, %v1288
        %v1290 = vpack.c.bf16 %v1267, %v1267
        %v1291 = vpack.c.bf16 %v1278, %v1278
        %v1292 = vpack.c.bf16 %v1289, %v1289
        %v1293 = vld [vmem:[#allocation9] sm:$0xf]
        %v1294 = vld [vmem:[#allocation9 + $0x4] sm:$0xf]
        %v1295 = vld [vmem:[#allocation9 + $0x8] sm:$0xf]
        %v1296 = vld [vmem:[#allocation9 + $0xc] sm:$0xf]
        %v1297 = vld [vmem:[%s9] sm:$0x1]
        %v1299 = vperm.slane %v1297, 0
        %v1304 = vunpack.c.l.b16 %v1290
        %v1305 = vunpack.c.l.b16 %v1291
        %v1306 = vunpack.c.l.b16 %v1292
        %v1307 = vsel %vm699, %v1305, %v1304
        %v1308 = vsel %vm702, %v1306, %v1307
        %v1309 = vpack.c.b16 %v1308, %v1308
        %v1314 = vunpack.c.l.b16 %v1293
        %v1315 = vunpack.c.l.b16 %v1294
        %v1316 = vunpack.c.l.b16 %v1295
        %v1317 = vunpack.c.l.b16 %v1296
        %v1318 = vpack.c.b16 %v1315, %v1314
        %v1319 = vpack.c.b16 %v1317, %v1316
        %v1323 = vsel %vm518, %v1309, 0
        %1325 = vmatpush.bf16.msra.mxu0 0
        %1326 = vmatpush.bf16.msra.mxu0 0
        %1327 = vmatpush.bf16.msra.mxu0 0
        %1328 = vmatpush.bf16.msra.mxu0 0
        %1329 = vmatpush.bf16.msra.mxu0 0
        %1330 = vmatpush.bf16.msra.mxu0 0
        %1331 = vmatpush.bf16.msra.mxu0 %v1319
        %1332 = vmatpush.bf16.msra.mxu0 %v1318
        %1333 = vmatmul.bf16.gmra.mxu0 %v1323
        %v1334 = vpop.f32.mrf.mxu0
        %v1335 = vadd.f32 %v1299, %v1334
        %v1336 = vpop.f32.mrf.mxu0
        %1337 = vdwg.mxu0
        %1338 = vst [vmem:[%s501] sm:$0x7] %v1335
        %p1339 = scmp.lt.s32.totalorder %s28, 1
        %s1340 = scalar_select %p1339, %s28, 1
        %s1341 = smul.addr %s1340, 4
        %s1342 = scalar_lea.vmem %s12, %s1341
        // Predicated region
        $region89: #{tpu_custom_call.1} parent=67 // pred_check
          %p1343 = pneg %p303
        $region90: #{tpu_custom_call.1} parent=67 // pred_check_branch
          %1345 = sbr.rel (%p1343) target = $region92
        $region91: #{tpu_custom_call.1} parent=67 // pred_region
          _
        $region92: #{tpu_custom_call.1} parent=67 // pred_fallthru
          _
      $region68: #{tpu_custom_call.1} parent=5 // pred_fallthru
        _
      %p1346 = scmp.le.s32.totalorder 2, %s23
      // Predicated region
      $region93: #{tpu_custom_call.1} parent=5 // pred_check
        %p1347 = pneg %p1346
      $region94: #{tpu_custom_call.1} parent=5 // pred_check_branch
        %1349 = sbr.rel (%p1347) target = $region96
      $region95: #{tpu_custom_call.1} parent=5 // pred_region
        %s1350 = ssub.s32 %s23, 2
        // Predicated region
        $region97: #{tpu_custom_call.1} parent=95 // pred_check
          %p1351 = pneg %p309
        $region98: #{tpu_custom_call.1} parent=95 // pred_check_branch
          %1353 = sbr.rel (%p1351) target = $region100
        $region99: #{tpu_custom_call.1} parent=95 // pred_region
          %p1354 = scmp.lt.s32.totalorder %s29, 1
          %s1355 = scalar_select %p1354, %s29, 1
          %s1356 = smul.addr %s1355, 4
          %s1357 = scalar_lea.vmem %s12, %s1356
        $region100: #{tpu_custom_call.1} parent=95 // pred_fallthru
          _
      $region96: #{tpu_custom_call.1} parent=5 // pred_fallthru
        _
    $region6: #{tpu_custom_call.1} parent=1 // loop_footer
      %s27 = sadd.s32 1, %s23
    $region7: #{tpu_custom_call.1} parent=1 // loop_footer_branch
      %22 = sbr.rel target = $region3
    $region8: #{tpu_custom_call.1} parent=1 // loop_exit
      _
    %1358 = vsyncpa [#allocation3], 1
    %s1359 = scalar_lea.sflag [#allocation3], 1
    %1360 = vsyncpa %s1359, 1
    %1361 = vsyncpa [#allocation5], 1
    %1362 = vsyncpa [#allocation8], 1

</llo_original>
